<compile_context>
chip_gen: v7x
topology: tpu7x:2x2x1
jax: 0.10.0
libtpu: 0.0.40
codegen_flags: <defaults>
</compile_context>

<pallas_src>
import functools

import jax
import jax.numpy as jnp
from jax import lax
from jax.experimental import pallas as pl
from jax.experimental.pallas import tpu as pltpu


# ------------------------------ Pallas kernel -------------------------------

def _cva_kernel(*refs, nh, scale, self_attn):
    """Fused two-pass ChannelViewAttn forward.

    Grid: (B, pass, L_tiles).  In-kernel shapes:
      activation tiles : (1, C, Lt)  f32 (cast to bf16 in VMEM)
      wq/wk/wv/wp      : (C, C)      bf16
      bq/bk/bp         : (C, 1)      f32   (column -> broadcast along lanes)
      bv               : (1, C)      f32   (row -> used only in the fold step)
      o tile           : (1, C, Lt)  bf16
      scratch          : s (nh,hd,hd) f32, W_eff (C,C) bf16, b_eff (C,1) f32
    """
    if self_attn:
        (x_ref,
         wq_ref, bq_ref, wk_ref, bk_ref, wv_ref, bv_ref, wp_ref, bp_ref,
         o_ref, s_scr, weff_scr, beff_scr) = refs
        xq_ref = xkv_ref = x_ref
    else:
        (xq_ref, xkv_ref,
         wq_ref, bq_ref, wk_ref, bk_ref, wv_ref, bv_ref, wp_ref, bp_ref,
         o_ref, s_scr, weff_scr, beff_scr) = refs

    C = wq_ref.shape[0]
    hd = C // nh
    p_idx = pl.program_id(1)
    l_idx = pl.program_id(2)
    nl = pl.num_programs(2)

    # -------- pass 0: accumulate per-head grams S_h = Q_h K_h^T over L ------
    @pl.when(p_idx == 0)
    def _pass0():
        @pl.when(l_idx == 0)
        def _init():
            s_scr[...] = jnp.zeros_like(s_scr)

        xkv_t = xkv_ref[0].astype(jnp.bfloat16)                    # (C, Lt)
        xq_t = xkv_t if self_attn else xq_ref[0].astype(jnp.bfloat16)

        # 1x1 convs == channel matmuls; bias-add + bf16 cast fused so no
        # full-size f32 q/k buffers stay live.
        q = (jnp.dot(wq_ref[...], xq_t, preferred_element_type=jnp.float32)
             + bq_ref[...]).astype(jnp.bfloat16)                   # (C, Lt)
        k = (jnp.dot(wk_ref[...], xkv_t, preferred_element_type=jnp.float32)
             + bk_ref[...]).astype(jnp.bfloat16)                   # (C, Lt)

        for h in range(nh):                                        # static unroll
            sl = slice(h * hd, (h + 1) * hd)                       # hd-aligned
            s_scr[h] += lax.dot_general(
                q[sl], k[sl], (((1,), (1,)), ((), ())),
                preferred_element_type=jnp.float32)                # (hd, hd)

        # ---- fold (once per batch): softmax + Wv + Wp -> effective weight --
        @pl.when(l_idx == nl - 1)
        def _fold():
            w_eff = jnp.zeros((C, C), jnp.float32)
            b_eff = bp_ref[...]                                    # (C, 1) f32
            bv_row = bv_ref[...]                                   # (1, C) f32
            for h in range(nh):
                sl = slice(h * hd, (h + 1) * hd)
                s = s_scr[h] * scale                               # scale folded here
                s = s - jnp.max(s, axis=-1, keepdims=True)
                e = jnp.exp(s)
                p = e * pl.reciprocal(jnp.sum(e, axis=-1, keepdims=True),
                                      approx=True)                 # (hd, hd) f32
                # M_h = Wp[:, h] @ P_h ;  W_eff += M_h @ Wv[h, :]
                m = jnp.dot(wp_ref[:, sl], p.astype(jnp.bfloat16),
                            preferred_element_type=jnp.float32)    # (C, hd)
                w_eff = w_eff + jnp.dot(m.astype(jnp.bfloat16), wv_ref[sl, :],
                                        preferred_element_type=jnp.float32)
                b_eff = b_eff + jnp.sum(m * bv_row[:, sl], axis=1, keepdims=True)
            weff_scr[...] = w_eff.astype(jnp.bfloat16)
            beff_scr[...] = b_eff

    # -------- pass 1: stream L tiles through the folded projection ----------
    @pl.when(p_idx == 1)
    def _pass1():
        xkv_t = xkv_ref[0].astype(jnp.bfloat16)                    # (C, Lt)
        y = (jnp.dot(weff_scr[...], xkv_t, preferred_element_type=jnp.float32)
             + beff_scr[...])
        o_ref[0] = y.astype(o_ref.dtype)


# ------------------------------ module wrapper -------------------------------

def channel_view_attn(params, q_nchw, kv_nchw=None, *, l_tile=None,
                      out_dtype=jnp.bfloat16):
    """ChannelViewAttn.forward(q, kv=None). Inputs NCHW f32, output NCHW bf16."""
    self_attn = (kv_nchw is None) or (kv_nchw is q_nchw)
    B, C, H, W = q_nchw.shape
    L = H * W
    nh = int(params['nh'])
    assert C % nh == 0
    hd = C // nh
    # Per-head sublane slices must land on vreg tile boundaries (8 f32 / 16 bf16).
    assert hd % 8 == 0, "head_dim must be a multiple of 8 (16 preferred for bf16)"
    # TODO(synk): pad C / hd to alignment instead of asserting.

    if l_tile is None:
        for cand in (512, 256, 128):
            if L % cand == 0:
                l_tile = cand
                break
        else:
            l_tile = L
    assert L % l_tile == 0 and (l_tile == L or l_tile % 128 == 0)
    nl = L // l_tile
    scale = float(L) ** -0.5

    # Activations stay in their incoming dtype (f32); kernel casts per tile.
    xq = q_nchw.reshape(B, C, L)
    if not self_attn:
        assert kv_nchw.shape == q_nchw.shape
        xkv = kv_nchw.reshape(B, C, L)

    # Index maps. pass axis p: 0 = gram accumulation, 1 = apply.
    def kv_map(b, p, l):
        return (b, 0, l)

    def q_map(b, p, l):            # park on the last tile during pass 1
        return (b, 0, l * (1 - p) + (nl - 1) * p)   # -> no wasted re-DMA

    def out_map(b, p, l):          # park on tile 0 during pass 0 (never
        return (b, 0, l * p)       # written back -> no garbage HBM traffic)

    act_q_spec = pl.BlockSpec((1, C, l_tile), q_map)
    act_kv_spec = pl.BlockSpec((1, C, l_tile), kv_map)
    w_spec = pl.BlockSpec((C, C), lambda b, p, l: (0, 0))
    bcol_spec = pl.BlockSpec((C, 1), lambda b, p, l: (0, 0))
    brow_spec = pl.BlockSpec((1, C), lambda b, p, l: (0, 0))

    weight_specs = [w_spec, bcol_spec,     # to_q
                    w_spec, bcol_spec,     # to_kv (k half)
                    w_spec, brow_spec,     # to_kv (v half) -- bv as a lane row
                    w_spec, bcol_spec]     # proj
    weight_args = (params['wq'], params['bq'],
                   params['wk'], params['bk'],
                   params['wv'], params['bv'],
                   params['wp'], params['bp'])

    if self_attn:
        in_specs = [act_kv_spec] + weight_specs
        operands = (xq,) + weight_args
    else:
        in_specs = [act_q_spec, act_kv_spec] + weight_specs
        operands = (xq, xkv) + weight_args

    # Explicit scoped-VMEM budget (double-buffered tiles + weights + scratch).
    act_bytes = jnp.dtype(q_nchw.dtype).itemsize
    est = ((1 if self_attn else 2) * 2 * C * l_tile * act_bytes
           + 2 * C * l_tile * 2
           + 4 * 2 * C * C * 2 + 8 * C * 128 * 4
           + nh * hd * hd * 4 + C * C * 2 + C * 128 * 4
           + 8 * C * l_tile * 4)
    vmem_limit = int(min(max(2 * est, 32 * 1024 * 1024), 48 * 1024 * 1024))

    out = pl.pallas_call(
        functools.partial(_cva_kernel, nh=nh, scale=scale, self_attn=self_attn),
        out_shape=jax.ShapeDtypeStruct((B, C, L), out_dtype),
        grid=(B, 2, nl),
        in_specs=in_specs,
        out_specs=pl.BlockSpec((1, C, l_tile), out_map),
        scratch_shapes=[
            pltpu.VMEM((nh, hd, hd), jnp.float32),   # per-head gram accumulator
            pltpu.VMEM((C, C), jnp.bfloat16),        # folded Wp . P . Wv
            pltpu.VMEM((C, 1), jnp.float32),         # folded bias
        ],
        compiler_params=pltpu.CompilerParams(
            dimension_semantics=("parallel", "arbitrary", "arbitrary"),
            vmem_limit_bytes=vmem_limit),
    )(*operands)
    return out.reshape(B, C, H, W)


# ------------------------------ parameters -----------------------------------

def init_params(key, dim, nh):
    """PyTorch-equivalent params: Conv2d(dim,dim,1), Conv2d(dim,2*dim,1),
    Conv2d(dim,dim,1). to_kv split row-wise into k/v halves (== torch.chunk).
    Weights bf16 for the MXU; biases f32 (bv stored as a (1, dim) lane row)."""
    k1, k2, k3, k4, k5, k6 = jax.random.split(key, 6)

    def w(k, co, ci):
        return 0.1 * jax.random.normal(k, (co, ci), jnp.float32)

    def b(k, co):
        return 0.05 * jax.random.normal(k, (co,), jnp.float32)

    wq, bq = w(k1, dim, dim), b(k2, dim)
    wkv, bkv = w(k3, 2 * dim, dim), b(k4, 2 * dim)
    wp, bp = w(k5, dim, dim), b(k6, dim)

    params = {
        'nh': nh,
        'wq': wq.astype(jnp.bfloat16), 'bq': bq.reshape(dim, 1),
        'wk': wkv[:dim].astype(jnp.bfloat16), 'bk': bkv[:dim].reshape(dim, 1),
        'wv': wkv[dim:].astype(jnp.bfloat16), 'bv': bkv[dim:].reshape(1, dim),
        'wp': wp.astype(jnp.bfloat16), 'bp': bp.reshape(dim, 1),
    }
    ref = {'wq': wq, 'bq': bq, 'wkv': wkv, 'bkv': bkv, 'wp': wp, 'bp': bp}
    return params, ref


def channel_view_attn_ref(ref, q_nchw, kv_nchw, nh):
    """Pure-JAX f32 reference mirroring the PyTorch module."""
    B, C, H, W = q_nchw.shape
    L = H * W

    def conv(x, wt, bs):
        return jnp.einsum('oc,bcl->bol', wt, x.reshape(B, C, L)) + bs[None, :, None]

    q = conv(q_nchw, ref['wq'], ref['bq'])
    kv = conv(kv_nchw, ref['wkv'], ref['bkv'])
    k, v = kv[:, :C], kv[:, C:]
    hd = C // nh
    q = q.reshape(B, nh, hd, L) * (float(L) ** -0.5)
    k = k.reshape(B, nh, hd, L)
    v = v.reshape(B, nh, hd, L)
    p = jax.nn.softmax(jnp.einsum('bhml,bhnl->bhmn', q, k), axis=-1)
    o = jnp.einsum('bhmn,bhnl->bhml', p, v).reshape(B, C, L)
    y = jnp.einsum('oc,bcl->bol', ref['wp'], o) + ref['bp'][None, :, None]
    return y.reshape(B, C, H, W)


# ----------------------------------- main ------------------------------------

if __name__ == "__main__":
    dim, nh = 64, 4            # head_dim = 16 -> vreg-aligned per-head slices
    B, H, W = 2, 16, 16        # L = 256

    key = jax.random.PRNGKey(0)
    kq, kkv, kp = jax.random.split(key, 3)
    q_in = jax.random.normal(kq, (B, dim, H, W), jnp.float32)
    kv_in = jax.random.normal(kkv, (B, dim, H, W), jnp.float32)

    params, ref_params = init_params(kp, dim, nh)

    # Cross-attention path, multi-tile L (l_tile=128 -> 2 L-tiles per batch).
    out = jax.block_until_ready(channel_view_attn(params, q_in, kv_in, l_tile=128))
    assert out.shape == (B, dim, H, W), out.shape
    out_f32 = out.astype(jnp.float32)
    assert bool(jnp.all(jnp.isfinite(out_f32)))

    ref_out = channel_view_attn_ref(ref_params, q_in, kv_in, nh)
    err = float(jnp.max(jnp.abs(out_f32 - ref_out) / (1.0 + jnp.abs(ref_out))))
    assert err < 5e-2, f"cross-attn err={err}"   # bf16 MXU + approx reciprocal

    # Self-attention path (kv=None): deduped single activation input, default tile.
    out_self = jax.block_until_ready(channel_view_attn(params, q_in))
    assert out_self.shape == (B, dim, H, W)
    ref_self = channel_view_attn_ref(ref_params, q_in, q_in, nh)
    err_s = float(jnp.max(jnp.abs(out_self.astype(jnp.float32) - ref_self)
                          / (1.0 + jnp.abs(ref_self))))
    assert err_s < 5e-2, f"self-attn err={err_s}"

    print("KERNEL_OK")
</pallas_src>

<mosaic_0001>
module attributes {stable_mosaic.version = 11 : i64} {
  func.func @_cva_kernel(%arg0: i32, %arg1: i32, %arg2: i32, %arg3: memref<1x64x128xf32, #tpu.memory_space<vmem>>, %arg4: memref<1x64x128xf32, #tpu.memory_space<vmem>>, %arg5: memref<64x64xbf16, #tpu.memory_space<vmem>>, %arg6: memref<64x1xf32, #tpu.memory_space<vmem>>, %arg7: memref<64x64xbf16, #tpu.memory_space<vmem>>, %arg8: memref<64x1xf32, #tpu.memory_space<vmem>>, %arg9: memref<64x64xbf16, #tpu.memory_space<vmem>>, %arg10: memref<1x64xf32, #tpu.memory_space<vmem>>, %arg11: memref<64x64xbf16, #tpu.memory_space<vmem>>, %arg12: memref<64x1xf32, #tpu.memory_space<vmem>>, %arg13: memref<1x64x128xbf16, #tpu.memory_space<vmem>>, %arg14: memref<4x16x16xf32, #tpu.memory_space<vmem>>, %arg15: memref<64x64xbf16, #tpu.memory_space<vmem>>, %arg16: memref<64x1xf32, #tpu.memory_space<vmem>>) attributes {dimension_semantics = [#tpu.dimension_semantics<parallel>, #tpu.dimension_semantics<arbitrary>, #tpu.dimension_semantics<arbitrary>], iteration_bounds = array<i64: 2, 2, 2>, scalar_prefetch = 0 : i64, scratch_operands = 3 : i64, tpu.core_type = #tpu.core_type<tc>, window_params = [{transform_indices = @transform_0, window_bounds = array<i64: 1, 64, 128>}, {transform_indices = @transform_1, window_bounds = array<i64: 1, 64, 128>}, {pipeline_mode = #tpu.pipeline_mode<synchronous>, transform_indices = @transform_2, window_bounds = array<i64: 64, 64>}, {pipeline_mode = #tpu.pipeline_mode<synchronous>, transform_indices = @transform_3, window_bounds = array<i64: 64, 1>}, {pipeline_mode = #tpu.pipeline_mode<synchronous>, transform_indices = @transform_4, window_bounds = array<i64: 64, 64>}, {pipeline_mode = #tpu.pipeline_mode<synchronous>, transform_indices = @transform_5, window_bounds = array<i64: 64, 1>}, {pipeline_mode = #tpu.pipeline_mode<synchronous>, transform_indices = @transform_6, window_bounds = array<i64: 64, 64>}, {pipeline_mode = #tpu.pipeline_mode<synchronous>, transform_indices = @transform_7, window_bounds = array<i64: 1, 64>}, {pipeline_mode = #tpu.pipeline_mode<synchronous>, transform_indices = @transform_8, window_bounds = array<i64: 64, 64>}, {pipeline_mode = #tpu.pipeline_mode<synchronous>, transform_indices = @transform_9, window_bounds = array<i64: 64, 1>}, {transform_indices = @transform_10, window_bounds = array<i64: 1, 64, 128>}]} {
    %c0_i32 = arith.constant 0 : i32
    %0 = arith.cmpi eq, %arg1, %c0_i32 : i32
    %1 = arith.extui %0 : i1 to i32
    %c0_i32_0 = arith.constant 0 : i32
    %2 = arith.cmpi ne, %1, %c0_i32_0 : i32
    scf.if %2 {
      %c0_i32_2 = arith.constant 0 : i32
      %6 = arith.cmpi eq, %arg2, %c0_i32_2 : i32
      %7 = arith.extui %6 : i1 to i32
      %c0_i32_3 = arith.constant 0 : i32
      %8 = arith.cmpi ne, %7, %c0_i32_3 : i32
      scf.if %8 {
        %cst_45 = arith.constant 0.000000e+00 : f32
        %66 = vector.broadcast %cst_45 : f32 to vector<4x16x16xf32>
        %c0_46 = arith.constant 0 : index
        %c0_47 = arith.constant 0 : index
        %c0_48 = arith.constant 0 : index
        %67 = vector.load %arg14[%c0_46, %c0_47, %c0_48] : memref<4x16x16xf32, #tpu.memory_space<vmem>>, vector<4x16x16xf32>
        tpu.vector_store %arg14[%c0_46, %c0_47, %c0_48], %66 {strides = array<i32>} : memref<4x16x16xf32, #tpu.memory_space<vmem>>, vector<4x16x16xf32>,
      } else {
      }
      %c0 = arith.constant 0 : index
      %c0_4 = arith.constant 0 : index
      %c0_5 = arith.constant 0 : index
      %9 = vector.load %arg4[%c0, %c0_4, %c0_5] : memref<1x64x128xf32, #tpu.memory_space<vmem>>, vector<1x64x128xf32>
      %10 = vector.shape_cast %9 : vector<1x64x128xf32> to vector<64x128xf32>
      %11 = arith.truncf %10 : vector<64x128xf32> to vector<64x128xbf16>
      %c0_6 = arith.constant 0 : index
      %c0_7 = arith.constant 0 : index
      %c0_8 = arith.constant 0 : index
      %12 = vector.load %arg3[%c0_6, %c0_7, %c0_8] : memref<1x64x128xf32, #tpu.memory_space<vmem>>, vector<1x64x128xf32>
      %13 = vector.shape_cast %12 : vector<1x64x128xf32> to vector<64x128xf32>
      %14 = arith.truncf %13 : vector<64x128xf32> to vector<64x128xbf16>
      %c0_9 = arith.constant 0 : index
      %c0_10 = arith.constant 0 : index
      %15 = vector.load %arg5[%c0_9, %c0_10] : memref<64x64xbf16, #tpu.memory_space<vmem>>, vector<64x64xbf16>
      %cst = arith.constant dense<0.000000e+00> : vector<64x128xf32>
      %16 = tpu.matmul %15, %14, %cst {dimension_numbers = #tpu.dot_dimension_numbers<[1], [0], [0], [1], [0, 0, 1, 1], [], []>} : vector<64x64xbf16>, vector<64x128xbf16>, vector<64x128xf32> -> vector<64x128xf32>
      %c0_11 = arith.constant 0 : index
      %c0_12 = arith.constant 0 : index
      %17 = vector.load %arg6[%c0_11, %c0_12] : memref<64x1xf32, #tpu.memory_space<vmem>>, vector<64x1xf32>
      %18 = vector.broadcast %17 : vector<64x1xf32> to vector<64x128xf32>
      %19 = arith.addf %16, %18 : vector<64x128xf32>
      %20 = arith.truncf %19 : vector<64x128xf32> to vector<64x128xbf16>
      %c0_13 = arith.constant 0 : index
      %c0_14 = arith.constant 0 : index
      %21 = vector.load %arg7[%c0_13, %c0_14] : memref<64x64xbf16, #tpu.memory_space<vmem>>, vector<64x64xbf16>
      %cst_15 = arith.constant dense<0.000000e+00> : vector<64x128xf32>
      %22 = tpu.matmul %21, %11, %cst_15 {dimension_numbers = #tpu.dot_dimension_numbers<[1], [0], [0], [1], [0, 0, 1, 1], [], []>} : vector<64x64xbf16>, vector<64x128xbf16>, vector<64x128xf32> -> vector<64x128xf32>
      %c0_16 = arith.constant 0 : index
      %c0_17 = arith.constant 0 : index
      %23 = vector.load %arg8[%c0_16, %c0_17] : memref<64x1xf32, #tpu.memory_space<vmem>>, vector<64x1xf32>
      %24 = vector.broadcast %23 : vector<64x1xf32> to vector<64x128xf32>
      %25 = arith.addf %22, %24 : vector<64x128xf32>
      %26 = arith.truncf %25 : vector<64x128xf32> to vector<64x128xbf16>
      %c0_18 = arith.constant 0 : index
      %c0_19 = arith.constant 0 : index
      %c0_20 = arith.constant 0 : index
      %27 = vector.load %arg14[%c0_18, %c0_19, %c0_20] : memref<4x16x16xf32, #tpu.memory_space<vmem>>, vector<1x16x16xf32>
      %28 = vector.shape_cast %27 : vector<1x16x16xf32> to vector<16x16xf32>
      %29 = vector.extract_strided_slice %20 {offsets = [0, 0], sizes = [16, 128], strides = [1, 1]} : vector<64x128xbf16> to vector<16x128xbf16>
      %30 = vector.extract_strided_slice %26 {offsets = [0, 0], sizes = [16, 128], strides = [1, 1]} : vector<64x128xbf16> to vector<16x128xbf16>
      %cst_21 = arith.constant dense<0.000000e+00> : vector<16x16xf32>
      %31 = tpu.matmul %29, %30, %cst_21 {dimension_numbers = #tpu.dot_dimension_numbers<[1], [1], [0], [0], [0, 0, 1, 0], [], []>} : vector<16x128xbf16>, vector<16x128xbf16>, vector<16x16xf32> -> vector<16x16xf32>
      %32 = arith.addf %28, %31 : vector<16x16xf32>
      %c0_22 = arith.constant 0 : index
      %c0_23 = arith.constant 0 : index
      %c0_24 = arith.constant 0 : index
      %33 = vector.load %arg14[%c0_22, %c0_23, %c0_24] : memref<4x16x16xf32, #tpu.memory_space<vmem>>, vector<1x16x16xf32>
      %34 = vector.shape_cast %33 : vector<1x16x16xf32> to vector<16x16xf32>
      %35 = vector.shape_cast %32 : vector<16x16xf32> to vector<1x16x16xf32>
      tpu.vector_store %arg14[%c0_22, %c0_23, %c0_24], %35 {strides = array<i32>} : memref<4x16x16xf32, #tpu.memory_space<vmem>>, vector<1x16x16xf32>,
      %c1 = arith.constant 1 : index
      %c0_25 = arith.constant 0 : index
      %c0_26 = arith.constant 0 : index
      %36 = vector.load %arg14[%c1, %c0_25, %c0_26] : memref<4x16x16xf32, #tpu.memory_space<vmem>>, vector<1x16x16xf32>
      %37 = vector.shape_cast %36 : vector<1x16x16xf32> to vector<16x16xf32>
      %38 = vector.extract_strided_slice %20 {offsets = [16, 0], sizes = [16, 128], strides = [1, 1]} : vector<64x128xbf16> to vector<16x128xbf16>
      %39 = vector.extract_strided_slice %26 {offsets = [16, 0], sizes = [16, 128], strides = [1, 1]} : vector<64x128xbf16> to vector<16x128xbf16>
      %cst_27 = arith.constant dense<0.000000e+00> : vector<16x16xf32>
      %40 = tpu.matmul %38, %39, %cst_27 {dimension_numbers = #tpu.dot_dimension_numbers<[1], [1], [0], [0], [0, 0, 1, 0], [], []>} : vector<16x128xbf16>, vector<16x128xbf16>, vector<16x16xf32> -> vector<16x16xf32>
      %41 = arith.addf %37, %40 : vector<16x16xf32>
      %c1_28 = arith.constant 1 : index
      %c0_29 = arith.constant 0 : index
      %c0_30 = arith.constant 0 : index
      %42 = vector.load %arg14[%c1_28, %c0_29, %c0_30] : memref<4x16x16xf32, #tpu.memory_space<vmem>>, vector<1x16x16xf32>
      %43 = vector.shape_cast %42 : vector<1x16x16xf32> to vector<16x16xf32>
      %44 = vector.shape_cast %41 : vector<16x16xf32> to vector<1x16x16xf32>
      tpu.vector_store %arg14[%c1_28, %c0_29, %c0_30], %44 {strides = array<i32>} : memref<4x16x16xf32, #tpu.memory_space<vmem>>, vector<1x16x16xf32>,
      %c2 = arith.constant 2 : index
      %c0_31 = arith.constant 0 : index
      %c0_32 = arith.constant 0 : index
      %45 = vector.load %arg14[%c2, %c0_31, %c0_32] : memref<4x16x16xf32, #tpu.memory_space<vmem>>, vector<1x16x16xf32>
      %46 = vector.shape_cast %45 : vector<1x16x16xf32> to vector<16x16xf32>
      %47 = vector.extract_strided_slice %20 {offsets = [32, 0], sizes = [16, 128], strides = [1, 1]} : vector<64x128xbf16> to vector<16x128xbf16>
      %48 = vector.extract_strided_slice %26 {offsets = [32, 0], sizes = [16, 128], strides = [1, 1]} : vector<64x128xbf16> to vector<16x128xbf16>
      %cst_33 = arith.constant dense<0.000000e+00> : vector<16x16xf32>
      %49 = tpu.matmul %47, %48, %cst_33 {dimension_numbers = #tpu.dot_dimension_numbers<[1], [1], [0], [0], [0, 0, 1, 0], [], []>} : vector<16x128xbf16>, vector<16x128xbf16>, vector<16x16xf32> -> vector<16x16xf32>
      %50 = arith.addf %46, %49 : vector<16x16xf32>
      %c2_34 = arith.constant 2 : index
      %c0_35 = arith.constant 0 : index
      %c0_36 = arith.constant 0 : index
      %51 = vector.load %arg14[%c2_34, %c0_35, %c0_36] : memref<4x16x16xf32, #tpu.memory_space<vmem>>, vector<1x16x16xf32>
      %52 = vector.shape_cast %51 : vector<1x16x16xf32> to vector<16x16xf32>
      %53 = vector.shape_cast %50 : vector<16x16xf32> to vector<1x16x16xf32>
      tpu.vector_store %arg14[%c2_34, %c0_35, %c0_36], %53 {strides = array<i32>} : memref<4x16x16xf32, #tpu.memory_space<vmem>>, vector<1x16x16xf32>,
      %c3 = arith.constant 3 : index
      %c0_37 = arith.constant 0 : index
      %c0_38 = arith.constant 0 : index
      %54 = vector.load %arg14[%c3, %c0_37, %c0_38] : memref<4x16x16xf32, #tpu.memory_space<vmem>>, vector<1x16x16xf32>
      %55 = vector.shape_cast %54 : vector<1x16x16xf32> to vector<16x16xf32>
      %56 = vector.extract_strided_slice %20 {offsets = [48, 0], sizes = [16, 128], strides = [1, 1]} : vector<64x128xbf16> to vector<16x128xbf16>
      %57 = vector.extract_strided_slice %26 {offsets = [48, 0], sizes = [16, 128], strides = [1, 1]} : vector<64x128xbf16> to vector<16x128xbf16>
      %cst_39 = arith.constant dense<0.000000e+00> : vector<16x16xf32>
      %58 = tpu.matmul %56, %57, %cst_39 {dimension_numbers = #tpu.dot_dimension_numbers<[1], [1], [0], [0], [0, 0, 1, 0], [], []>} : vector<16x128xbf16>, vector<16x128xbf16>, vector<16x16xf32> -> vector<16x16xf32>
      %59 = arith.addf %55, %58 : vector<16x16xf32>
      %c3_40 = arith.constant 3 : index
      %c0_41 = arith.constant 0 : index
      %c0_42 = arith.constant 0 : index
      %60 = vector.load %arg14[%c3_40, %c0_41, %c0_42] : memref<4x16x16xf32, #tpu.memory_space<vmem>>, vector<1x16x16xf32>
      %61 = vector.shape_cast %60 : vector<1x16x16xf32> to vector<16x16xf32>
      %62 = vector.shape_cast %59 : vector<16x16xf32> to vector<1x16x16xf32>
      tpu.vector_store %arg14[%c3_40, %c0_41, %c0_42], %62 {strides = array<i32>} : memref<4x16x16xf32, #tpu.memory_space<vmem>>, vector<1x16x16xf32>,
      %c1_i32_43 = arith.constant 1 : i32
      %63 = arith.cmpi eq, %arg2, %c1_i32_43 : i32
      %64 = arith.extui %63 : i1 to i32
      %c0_i32_44 = arith.constant 0 : i32
      %65 = arith.cmpi ne, %64, %c0_i32_44 : i32
      scf.if %65 {
        %cst_45 = arith.constant 0.000000e+00 : f32
        %66 = vector.broadcast %cst_45 : f32 to vector<64x64xf32>
        %c0_46 = arith.constant 0 : index
        %c0_47 = arith.constant 0 : index
        %67 = vector.load %arg12[%c0_46, %c0_47] : memref<64x1xf32, #tpu.memory_space<vmem>>, vector<64x1xf32>
        %c0_48 = arith.constant 0 : index
        %c0_49 = arith.constant 0 : index
        %68 = vector.load %arg10[%c0_48, %c0_49] : memref<1x64xf32, #tpu.memory_space<vmem>>, vector<1x64xf32>
        %c0_50 = arith.constant 0 : index
        %c0_51 = arith.constant 0 : index
        %c0_52 = arith.constant 0 : index
        %69 = vector.load %arg14[%c0_50, %c0_51, %c0_52] : memref<4x16x16xf32, #tpu.memory_space<vmem>>, vector<1x16x16xf32>
        %70 = vector.shape_cast %69 : vector<1x16x16xf32> to vector<16x16xf32>
        %cst_53 = arith.constant 6.250000e-02 : f32
        %71 = vector.broadcast %cst_53 : f32 to vector<16x16xf32>
        %72 = arith.mulf %70, %71 : vector<16x16xf32>
        %cst_54 = arith.constant dense<0xFF800000> : vector<16xf32>
        %73 = vector.multi_reduction <maximumf>, %72, %cst_54 [1] : vector<16x16xf32> to vector<16xf32>
        %74 = vector.shape_cast %73 : vector<16xf32> to vector<16x1xf32>
        %75 = vector.broadcast %74 : vector<16x1xf32> to vector<16x16xf32>
        %76 = arith.subf %72, %75 : vector<16x16xf32>
        %77 = math.exp %76 : vector<16x16xf32>
        %cst_55 = arith.constant dense<0.000000e+00> : vector<16xf32>
        %78 = vector.multi_reduction <add>, %77, %cst_55 [1] : vector<16x16xf32> to vector<16xf32>
        %79 = vector.shape_cast %78 : vector<16xf32> to vector<16x1xf32>
        %80 = tpu.reciprocal %79 {approx = true} : vector<16x1xf32> -> vector<16x1xf32>
        %81 = vector.broadcast %80 : vector<16x1xf32> to vector<16x16xf32>
        %82 = arith.mulf %77, %81 : vector<16x16xf32>
        %c0_56 = arith.constant 0 : index
        %c0_57 = arith.constant 0 : index
        %83 = vector.load %arg11[%c0_56, %c0_57] : memref<64x64xbf16, #tpu.memory_space<vmem>>, vector<64x16xbf16>
        %84 = arith.truncf %82 : vector<16x16xf32> to vector<16x16xbf16>
        %cst_58 = arith.constant dense<0.000000e+00> : vector<64x16xf32>
        %85 = tpu.matmul %83, %84, %cst_58 {dimension_numbers = #tpu.dot_dimension_numbers<[1], [0], [0], [1], [0, 0, 1, 1], [], []>} : vector<64x16xbf16>, vector<16x16xbf16>, vector<64x16xf32> -> vector<64x16xf32>
        %86 = arith.truncf %85 : vector<64x16xf32> to vector<64x16xbf16>
        %c0_59 = arith.constant 0 : index
        %c0_60 = arith.constant 0 : index
        %87 = vector.load %arg9[%c0_59, %c0_60] : memref<64x64xbf16, #tpu.memory_space<vmem>>, vector<16x64xbf16>
        %cst_61 = arith.constant dense<0.000000e+00> : vector<64x64xf32>
        %88 = tpu.matmul %86, %87, %cst_61 {dimension_numbers = #tpu.dot_dimension_numbers<[1], [0], [0], [1], [0, 0, 1, 1], [], []>} : vector<64x16xbf16>, vector<16x64xbf16>, vector<64x64xf32> -> vector<64x64xf32>
        %89 = arith.addf %66, %88 : vector<64x64xf32>
        %90 = vector.extract_strided_slice %68 {offsets = [0, 0], sizes = [1, 16], strides = [1, 1]} : vector<1x64xf32> to vector<1x16xf32>
        %91 = vector.broadcast %90 : vector<1x16xf32> to vector<64x16xf32>
        %92 = arith.mulf %85, %91 : vector<64x16xf32>
        %cst_62 = arith.constant dense<0.000000e+00> : vector<64xf32>
        %93 = vector.multi_reduction <add>, %92, %cst_62 [1] : vector<64x16xf32> to vector<64xf32>
        %94 = vector.shape_cast %93 : vector<64xf32> to vector<64x1xf32>
        %95 = arith.addf %67, %94 : vector<64x1xf32>
        %c1_63 = arith.constant 1 : index
        %c0_64 = arith.constant 0 : index
        %c0_65 = arith.constant 0 : index
        %96 = vector.load %arg14[%c1_63, %c0_64, %c0_65] : memref<4x16x16xf32, #tpu.memory_space<vmem>>, vector<1x16x16xf32>
        %97 = vector.shape_cast %96 : vector<1x16x16xf32> to vector<16x16xf32>
        %cst_66 = arith.constant 6.250000e-02 : f32
        %98 = vector.broadcast %cst_66 : f32 to vector<16x16xf32>
        %99 = arith.mulf %97, %98 : vector<16x16xf32>
        %cst_67 = arith.constant dense<0xFF800000> : vector<16xf32>
        %100 = vector.multi_reduction <maximumf>, %99, %cst_67 [1] : vector<16x16xf32> to vector<16xf32>
        %101 = vector.shape_cast %100 : vector<16xf32> to vector<16x1xf32>
        %102 = vector.broadcast %101 : vector<16x1xf32> to vector<16x16xf32>
        %103 = arith.subf %99, %102 : vector<16x16xf32>
        %104 = math.exp %103 : vector<16x16xf32>
        %cst_68 = arith.constant dense<0.000000e+00> : vector<16xf32>
        %105 = vector.multi_reduction <add>, %104, %cst_68 [1] : vector<16x16xf32> to vector<16xf32>
        %106 = vector.shape_cast %105 : vector<16xf32> to vector<16x1xf32>
        %107 = tpu.reciprocal %106 {approx = true} : vector<16x1xf32> -> vector<16x1xf32>
        %108 = vector.broadcast %107 : vector<16x1xf32> to vector<16x16xf32>
        %109 = arith.mulf %104, %108 : vector<16x16xf32>
        %c0_69 = arith.constant 0 : index
        %c16 = arith.constant 16 : index
        %110 = vector.load %arg11[%c0_69, %c16] : memref<64x64xbf16, #tpu.memory_space<vmem>>, vector<64x16xbf16>
        %111 = arith.truncf %109 : vector<16x16xf32> to vector<16x16xbf16>
        %cst_70 = arith.constant dense<0.000000e+00> : vector<64x16xf32>
        %112 = tpu.matmul %110, %111, %cst_70 {dimension_numbers = #tpu.dot_dimension_numbers<[1], [0], [0], [1], [0, 0, 1, 1], [], []>} : vector<64x16xbf16>, vector<16x16xbf16>, vector<64x16xf32> -> vector<64x16xf32>
        %113 = arith.truncf %112 : vector<64x16xf32> to vector<64x16xbf16>
        %c16_71 = arith.constant 16 : index
        %c0_72 = arith.constant 0 : index
        %114 = vector.load %arg9[%c16_71, %c0_72] : memref<64x64xbf16, #tpu.memory_space<vmem>>, vector<16x64xbf16>
        %cst_73 = arith.constant dense<0.000000e+00> : vector<64x64xf32>
        %115 = tpu.matmul %113, %114, %cst_73 {dimension_numbers = #tpu.dot_dimension_numbers<[1], [0], [0], [1], [0, 0, 1, 1], [], []>} : vector<64x16xbf16>, vector<16x64xbf16>, vector<64x64xf32> -> vector<64x64xf32>
        %116 = arith.addf %89, %115 : vector<64x64xf32>
        %117 = vector.extract_strided_slice %68 {offsets = [0, 16], sizes = [1, 16], strides = [1, 1]} : vector<1x64xf32> to vector<1x16xf32>
        %118 = vector.broadcast %117 : vector<1x16xf32> to vector<64x16xf32>
        %119 = arith.mulf %112, %118 : vector<64x16xf32>
        %cst_74 = arith.constant dense<0.000000e+00> : vector<64xf32>
        %120 = vector.multi_reduction <add>, %119, %cst_74 [1] : vector<64x16xf32> to vector<64xf32>
        %121 = vector.shape_cast %120 : vector<64xf32> to vector<64x1xf32>
        %122 = arith.addf %95, %121 : vector<64x1xf32>
        %c2_75 = arith.constant 2 : index
        %c0_76 = arith.constant 0 : index
        %c0_77 = arith.constant 0 : index
        %123 = vector.load %arg14[%c2_75, %c0_76, %c0_77] : memref<4x16x16xf32, #tpu.memory_space<vmem>>, vector<1x16x16xf32>
        %124 = vector.shape_cast %123 : vector<1x16x16xf32> to vector<16x16xf32>
        %cst_78 = arith.constant 6.250000e-02 : f32
        %125 = vector.broadcast %cst_78 : f32 to vector<16x16xf32>
        %126 = arith.mulf %124, %125 : vector<16x16xf32>
        %cst_79 = arith.constant dense<0xFF800000> : vector<16xf32>
        %127 = vector.multi_reduction <maximumf>, %126, %cst_79 [1] : vector<16x16xf32> to vector<16xf32>
        %128 = vector.shape_cast %127 : vector<16xf32> to vector<16x1xf32>
        %129 = vector.broadcast %128 : vector<16x1xf32> to vector<16x16xf32>
        %130 = arith.subf %126, %129 : vector<16x16xf32>
        %131 = math.exp %130 : vector<16x16xf32>
        %cst_80 = arith.constant dense<0.000000e+00> : vector<16xf32>
        %132 = vector.multi_reduction <add>, %131, %cst_80 [1] : vector<16x16xf32> to vector<16xf32>
        %133 = vector.shape_cast %132 : vector<16xf32> to vector<16x1xf32>
        %134 = tpu.reciprocal %133 {approx = true} : vector<16x1xf32> -> vector<16x1xf32>
        %135 = vector.broadcast %134 : vector<16x1xf32> to vector<16x16xf32>
        %136 = arith.mulf %131, %135 : vector<16x16xf32>
        %c0_81 = arith.constant 0 : index
        %c32 = arith.constant 32 : index
        %137 = vector.load %arg11[%c0_81, %c32] : memref<64x64xbf16, #tpu.memory_space<vmem>>, vector<64x16xbf16>
        %138 = arith.truncf %136 : vector<16x16xf32> to vector<16x16xbf16>
        %cst_82 = arith.constant dense<0.000000e+00> : vector<64x16xf32>
        %139 = tpu.matmul %137, %138, %cst_82 {dimension_numbers = #tpu.dot_dimension_numbers<[1], [0], [0], [1], [0, 0, 1, 1], [], []>} : vector<64x16xbf16>, vector<16x16xbf16>, vector<64x16xf32> -> vector<64x16xf32>
        %140 = arith.truncf %139 : vector<64x16xf32> to vector<64x16xbf16>
        %c32_83 = arith.constant 32 : index
        %c0_84 = arith.constant 0 : index
        %141 = vector.load %arg9[%c32_83, %c0_84] : memref<64x64xbf16, #tpu.memory_space<vmem>>, vector<16x64xbf16>
        %cst_85 = arith.constant dense<0.000000e+00> : vector<64x64xf32>
        %142 = tpu.matmul %140, %141, %cst_85 {dimension_numbers = #tpu.dot_dimension_numbers<[1], [0], [0], [1], [0, 0, 1, 1], [], []>} : vector<64x16xbf16>, vector<16x64xbf16>, vector<64x64xf32> -> vector<64x64xf32>
        %143 = arith.addf %116, %142 : vector<64x64xf32>
        %144 = vector.extract_strided_slice %68 {offsets = [0, 32], sizes = [1, 16], strides = [1, 1]} : vector<1x64xf32> to vector<1x16xf32>
        %145 = vector.broadcast %144 : vector<1x16xf32> to vector<64x16xf32>
        %146 = arith.mulf %139, %145 : vector<64x16xf32>
        %cst_86 = arith.constant dense<0.000000e+00> : vector<64xf32>
        %147 = vector.multi_reduction <add>, %146, %cst_86 [1] : vector<64x16xf32> to vector<64xf32>
        %148 = vector.shape_cast %147 : vector<64xf32> to vector<64x1xf32>
        %149 = arith.addf %122, %148 : vector<64x1xf32>
        %c3_87 = arith.constant 3 : index
        %c0_88 = arith.constant 0 : index
        %c0_89 = arith.constant 0 : index
        %150 = vector.load %arg14[%c3_87, %c0_88, %c0_89] : memref<4x16x16xf32, #tpu.memory_space<vmem>>, vector<1x16x16xf32>
        %151 = vector.shape_cast %150 : vector<1x16x16xf32> to vector<16x16xf32>
        %cst_90 = arith.constant 6.250000e-02 : f32
        %152 = vector.broadcast %cst_90 : f32 to vector<16x16xf32>
        %153 = arith.mulf %151, %152 : vector<16x16xf32>
        %cst_91 = arith.constant dense<0xFF800000> : vector<16xf32>
        %154 = vector.multi_reduction <maximumf>, %153, %cst_91 [1] : vector<16x16xf32> to vector<16xf32>
        %155 = vector.shape_cast %154 : vector<16xf32> to vector<16x1xf32>
        %156 = vector.broadcast %155 : vector<16x1xf32> to vector<16x16xf32>
        %157 = arith.subf %153, %156 : vector<16x16xf32>
        %158 = math.exp %157 : vector<16x16xf32>
        %cst_92 = arith.constant dense<0.000000e+00> : vector<16xf32>
        %159 = vector.multi_reduction <add>, %158, %cst_92 [1] : vector<16x16xf32> to vector<16xf32>
        %160 = vector.shape_cast %159 : vector<16xf32> to vector<16x1xf32>
        %161 = tpu.reciprocal %160 {approx = true} : vector<16x1xf32> -> vector<16x1xf32>
        %162 = vector.broadcast %161 : vector<16x1xf32> to vector<16x16xf32>
        %163 = arith.mulf %158, %162 : vector<16x16xf32>
        %c0_93 = arith.constant 0 : index
        %c48 = arith.constant 48 : index
        %164 = vector.load %arg11[%c0_93, %c48] : memref<64x64xbf16, #tpu.memory_space<vmem>>, vector<64x16xbf16>
        %165 = arith.truncf %163 : vector<16x16xf32> to vector<16x16xbf16>
        %cst_94 = arith.constant dense<0.000000e+00> : vector<64x16xf32>
        %166 = tpu.matmul %164, %165, %cst_94 {dimension_numbers = #tpu.dot_dimension_numbers<[1], [0], [0], [1], [0, 0, 1, 1], [], []>} : vector<64x16xbf16>, vector<16x16xbf16>, vector<64x16xf32> -> vector<64x16xf32>
        %167 = arith.truncf %166 : vector<64x16xf32> to vector<64x16xbf16>
        %c48_95 = arith.constant 48 : index
        %c0_96 = arith.constant 0 : index
        %168 = vector.load %arg9[%c48_95, %c0_96] : memref<64x64xbf16, #tpu.memory_space<vmem>>, vector<16x64xbf16>
        %cst_97 = arith.constant dense<0.000000e+00> : vector<64x64xf32>
        %169 = tpu.matmul %167, %168, %cst_97 {dimension_numbers = #tpu.dot_dimension_numbers<[1], [0], [0], [1], [0, 0, 1, 1], [], []>} : vector<64x16xbf16>, vector<16x64xbf16>, vector<64x64xf32> -> vector<64x64xf32>
        %170 = arith.addf %143, %169 : vector<64x64xf32>
        %171 = vector.extract_strided_slice %68 {offsets = [0, 48], sizes = [1, 16], strides = [1, 1]} : vector<1x64xf32> to vector<1x16xf32>
        %172 = vector.broadcast %171 : vector<1x16xf32> to vector<64x16xf32>
        %173 = arith.mulf %166, %172 : vector<64x16xf32>
        %cst_98 = arith.constant dense<0.000000e+00> : vector<64xf32>
        %174 = vector.multi_reduction <add>, %173, %cst_98 [1] : vector<64x16xf32> to vector<64xf32>
        %175 = vector.shape_cast %174 : vector<64xf32> to vector<64x1xf32>
        %176 = arith.addf %149, %175 : vector<64x1xf32>
        %177 = arith.truncf %170 : vector<64x64xf32> to vector<64x64xbf16>
        %c0_99 = arith.constant 0 : index
        %c0_100 = arith.constant 0 : index
        %178 = vector.load %arg15[%c0_99, %c0_100] : memref<64x64xbf16, #tpu.memory_space<vmem>>, vector<64x64xbf16>
        tpu.vector_store %arg15[%c0_99, %c0_100], %177 {strides = array<i32>} : memref<64x64xbf16, #tpu.memory_space<vmem>>, vector<64x64xbf16>,
        %c0_101 = arith.constant 0 : index
        %c0_102 = arith.constant 0 : index
        %179 = vector.load %arg16[%c0_101, %c0_102] : memref<64x1xf32, #tpu.memory_space<vmem>>, vector<64x1xf32>
        tpu.vector_store %arg16[%c0_101, %c0_102], %176 {strides = array<i32>} : memref<64x1xf32, #tpu.memory_space<vmem>>, vector<64x1xf32>,
      } else {
      }
    } else {
    }
    %c1_i32 = arith.constant 1 : i32
    %3 = arith.cmpi eq, %arg1, %c1_i32 : i32
    %4 = arith.extui %3 : i1 to i32
    %c0_i32_1 = arith.constant 0 : i32
    %5 = arith.cmpi ne, %4, %c0_i32_1 : i32
    scf.if %5 {
      %c0 = arith.constant 0 : index
      %c0_2 = arith.constant 0 : index
      %c0_3 = arith.constant 0 : index
      %6 = vector.load %arg4[%c0, %c0_2, %c0_3] : memref<1x64x128xf32, #tpu.memory_space<vmem>>, vector<1x64x128xf32>
      %7 = vector.shape_cast %6 : vector<1x64x128xf32> to vector<64x128xf32>
      %8 = arith.truncf %7 : vector<64x128xf32> to vector<64x128xbf16>
      %c0_4 = arith.constant 0 : index
      %c0_5 = arith.constant 0 : index
      %9 = vector.load %arg15[%c0_4, %c0_5] : memref<64x64xbf16, #tpu.memory_space<vmem>>, vector<64x64xbf16>
      %cst = arith.constant dense<0.000000e+00> : vector<64x128xf32>
      %10 = tpu.matmul %9, %8, %cst {dimension_numbers = #tpu.dot_dimension_numbers<[1], [0], [0], [1], [0, 0, 1, 1], [], []>} : vector<64x64xbf16>, vector<64x128xbf16>, vector<64x128xf32> -> vector<64x128xf32>
      %c0_6 = arith.constant 0 : index
      %c0_7 = arith.constant 0 : index
      %11 = vector.load %arg16[%c0_6, %c0_7] : memref<64x1xf32, #tpu.memory_space<vmem>>, vector<64x1xf32>
      %12 = vector.broadcast %11 : vector<64x1xf32> to vector<64x128xf32>
      %13 = arith.addf %10, %12 : vector<64x128xf32>
      %14 = arith.truncf %13 : vector<64x128xf32> to vector<64x128xbf16>
      %c0_8 = arith.constant 0 : index
      %c0_9 = arith.constant 0 : index
      %c0_10 = arith.constant 0 : index
      %15 = vector.load %arg13[%c0_8, %c0_9, %c0_10] : memref<1x64x128xbf16, #tpu.memory_space<vmem>>, vector<1x64x128xbf16>
      %16 = vector.shape_cast %15 : vector<1x64x128xbf16> to vector<64x128xbf16>
      %17 = vector.shape_cast %14 : vector<64x128xbf16> to vector<1x64x128xbf16>
      tpu.vector_store %arg13[%c0_8, %c0_9, %c0_10], %17 {strides = array<i32>} : memref<1x64x128xbf16, #tpu.memory_space<vmem>>, vector<1x64x128xbf16>,
    } else {
    }
    return
  }
  func.func @transform_0(%arg0: i32, %arg1: i32, %arg2: i32) -> (i32, i32, i32) {
    %c1_i32 = arith.constant 1 : i32
    %0 = arith.subi %c1_i32, %arg1 : i32
    %1 = arith.muli %arg2, %0 : i32
    %c1_i32_0 = arith.constant 1 : i32
    %2 = arith.muli %c1_i32_0, %arg1 : i32
    %3 = arith.addi %1, %2 : i32
    %c0_i32 = arith.constant 0 : i32
    %c0_i32_1 = arith.constant 0 : i32
    return %arg0, %c0_i32, %3 : i32, i32, i32
  }
  func.func @transform_1(%arg0: i32, %arg1: i32, %arg2: i32) -> (i32, i32, i32) {
    %c0_i32 = arith.constant 0 : i32
    %c0_i32_0 = arith.constant 0 : i32
    return %arg0, %c0_i32, %arg2 : i32, i32, i32
  }
  func.func @transform_2(%arg0: i32, %arg1: i32, %arg2: i32) -> (i32, i32) {
    %c0_i32 = arith.constant 0 : i32
    %c0_i32_0 = arith.constant 0 : i32
    %c0_i32_1 = arith.constant 0 : i32
    return %c0_i32, %c0_i32_0 : i32, i32
  }
  func.func @transform_3(%arg0: i32, %arg1: i32, %arg2: i32) -> (i32, i32) {
    %c0_i32 = arith.constant 0 : i32
    %c0_i32_0 = arith.constant 0 : i32
    %c0_i32_1 = arith.constant 0 : i32
    return %c0_i32, %c0_i32_0 : i32, i32
  }
  func.func @transform_4(%arg0: i32, %arg1: i32, %arg2: i32) -> (i32, i32) {
    %c0_i32 = arith.constant 0 : i32
    %c0_i32_0 = arith.constant 0 : i32
    %c0_i32_1 = arith.constant 0 : i32
    return %c0_i32, %c0_i32_0 : i32, i32
  }
  func.func @transform_5(%arg0: i32, %arg1: i32, %arg2: i32) -> (i32, i32) {
    %c0_i32 = arith.constant 0 : i32
    %c0_i32_0 = arith.constant 0 : i32
    %c0_i32_1 = arith.constant 0 : i32
    return %c0_i32, %c0_i32_0 : i32, i32
  }
  func.func @transform_6(%arg0: i32, %arg1: i32, %arg2: i32) -> (i32, i32) {
    %c0_i32 = arith.constant 0 : i32
    %c0_i32_0 = arith.constant 0 : i32
    %c0_i32_1 = arith.constant 0 : i32
    return %c0_i32, %c0_i32_0 : i32, i32
  }
  func.func @transform_7(%arg0: i32, %arg1: i32, %arg2: i32) -> (i32, i32) {
    %c0_i32 = arith.constant 0 : i32
    %c0_i32_0 = arith.constant 0 : i32
    %c0_i32_1 = arith.constant 0 : i32
    return %c0_i32, %c0_i32_0 : i32, i32
  }
  func.func @transform_8(%arg0: i32, %arg1: i32, %arg2: i32) -> (i32, i32) {
    %c0_i32 = arith.constant 0 : i32
    %c0_i32_0 = arith.constant 0 : i32
    %c0_i32_1 = arith.constant 0 : i32
    return %c0_i32, %c0_i32_0 : i32, i32
  }
  func.func @transform_9(%arg0: i32, %arg1: i32, %arg2: i32) -> (i32, i32) {
    %c0_i32 = arith.constant 0 : i32
    %c0_i32_0 = arith.constant 0 : i32
    %c0_i32_1 = arith.constant 0 : i32
    return %c0_i32, %c0_i32_0 : i32, i32
  }
  func.func @transform_10(%arg0: i32, %arg1: i32, %arg2: i32) -> (i32, i32, i32) {
    %0 = arith.muli %arg2, %arg1 : i32
    %c0_i32 = arith.constant 0 : i32
    %c0_i32_0 = arith.constant 0 : i32
    return %arg0, %c0_i32, %0 : i32, i32, i32
  }
}

</mosaic_0001>

<llo_original>
// kernel: tpu_custom_call.1
$region0: #{tpu_custom_call.1}
  #allocation0 [shape = 'u32[]', space=smem, size = 0x4, offset = 0x4, fixed_abs, tag = 'smem constant byte address 0x4 - core index']
  #allocation1 [shape = 'u32[144,128]{1,0:T(1,128)}', space=vmem, size = 0x12000, scoped, tag = 'internal scratch']
  #allocation2 [shape = 'f32[4,16,16]{2,1,0:T(8,128)}', space=vmem, size = 0x8000, scoped, tag = 'scratch operand']
  #allocation3 [shape = 'bf16[64,64]{1,0:T(16,128)(2,1)}', space=vmem, size = 0x4000, scoped, tag = 'scratch operand']
  #allocation4 [shape = 'f32[64,1]{1,0:T(8,128)}', space=vmem, size = 0x8000, scoped, tag = 'scratch operand']
  %s0 = inlined_call_operand.hbm [shape: f32[2,64,256], index: 0, kind: input, shape index: {}]
  %s1 = inlined_call_operand.hbm [shape: f32[2,64,256], index: 1, kind: input, shape index: {}]
  %s2 = inlined_call_operand.vmem [shape: bf16[64,64], index: 2, kind: input, shape index: {}]
  %s3 = inlined_call_operand.vmem [shape: f32[64,1], index: 3, kind: input, shape index: {}]
  %s4 = inlined_call_operand.vmem [shape: bf16[64,64], index: 4, kind: input, shape index: {}]
  %s5 = inlined_call_operand.vmem [shape: f32[64,1], index: 5, kind: input, shape index: {}]
  %s6 = inlined_call_operand.vmem [shape: bf16[64,64], index: 6, kind: input, shape index: {}]
  %s7 = inlined_call_operand.vmem [shape: f32[1,64], index: 7, kind: input, shape index: {}]
  %s8 = inlined_call_operand.vmem [shape: bf16[64,64], index: 8, kind: input, shape index: {}]
  %s9 = inlined_call_operand.vmem [shape: f32[64,1], index: 9, kind: input, shape index: {}]
  %s10 = inlined_call_operand.hbm [shape: bf16[2,64,256], index: 10, kind: output, shape index: {}]
  %s11 = sld [smem:[#allocation0]]
  $region97: #{tpu_custom_call.1} parent=0
    _
  %s13 = ssub.s32 1, %s11
  %s14 = scalar_select 0, %s13, %s11
  $region1: #{tpu_custom_call.1} parent=0
    #allocation5 [shape = 'u8[65536]{0}', space=vmem, size = 0x10000, scoped, tag = 'input window, operand 0']
    #allocation6 [shape = 's32[2]{0}', space=sflag, size = 0x8, scoped, tag = 'scoped memory for tpu_custom_call.1']
    #allocation7 [shape = 's32[2]{0}', space=sflag, size = 0x8, scoped, tag = 'scoped memory for tpu_custom_call.1']
    #allocation8 [shape = 'u8[65536]{0}', space=vmem, size = 0x10000, scoped, tag = 'input window, operand 1']
    #allocation9 [shape = 's32[2]{0}', space=sflag, size = 0x8, scoped, tag = 'scoped memory for tpu_custom_call.1']
    #allocation10 [shape = 'u8[32768]{0}', space=vmem, size = 0x8000, scoped, tag = 'output window, operand 0']
    %15 = vsyncpa [#allocation6], 0
    %s16 = scalar_lea.sflag [#allocation6], 1
    %17 = vsyncpa %s16, 0
    %18 = vsyncpa [#allocation9], 0
    %s19 = scalar_lea.sflag [#allocation9], 1
    %20 = vsyncpa %s19, 0
    %21 = vsyncpa [#allocation7], 0
    %s22 = scalar_lea.sflag [#allocation7], 1
    %23 = vsyncpa %s22, 0
    loop: start=0, step=1, limit=10
    $region2: #{tpu_custom_call.1} parent=1 // loop_pre_header
      _
    $region3: #{tpu_custom_call.1} parent=1 // loop_header
      %s25 = sphi 0, %s29
      %p26 = scmp.ge.s32.totalorder %s25, 10
      %s32 = sphi 0, %s51
      %s33 = sphi 0, %s47
      %s34 = sphi 0, %s43
      %s35 = sphi 0, %s32
      %s36 = sphi 0, %s33
      %s37 = sphi 0, %s34
      %s38 = sphi 0, %s35
      %s39 = sphi 0, %s36
      %s40 = sphi 0, %s37
      %s62 = sphi 0, %s64
      %s65 = sphi 0, %s62
      %s66 = sphi 0, %s65
      %s82 = sphi 0, %s66
      %s90 = sphi 0, %s92
      %s93 = sphi 0, %s90
      %s94 = sphi 0, %s93
      %s110 = sphi 0, %s94
      %s114 = sphi 0, %s114
      %s116 = sphi 0, %s114
      %s117 = sphi 0, %s116
      %s131 = sphi 0, %s117
      %s135 = sphi 0, %s135
      %s137 = sphi 0, %s135
      %s138 = sphi 0, %s137
      %s152 = sphi 0, %s138
      %s156 = sphi 0, %s156
      %s158 = sphi 0, %s156
      %s159 = sphi 0, %s158
      %s173 = sphi 0, %s159
      %s177 = sphi 0, %s177
      %s179 = sphi 0, %s177
      %s180 = sphi 0, %s179
      %s194 = sphi 0, %s180
      %s198 = sphi 0, %s198
      %s200 = sphi 0, %s198
      %s201 = sphi 0, %s200
      %s215 = sphi 0, %s201
      %s219 = sphi 0, %s219
      %s221 = sphi 0, %s219
      %s222 = sphi 0, %s221
      %s236 = sphi 0, %s222
      %s240 = sphi 0, %s240
      %s242 = sphi 0, %s240
      %s243 = sphi 0, %s242
      %s257 = sphi 0, %s243
      %s261 = sphi 0, %s261
      %s263 = sphi 0, %s261
      %s264 = sphi 0, %s263
      %s278 = sphi 0, %s264
      %s288 = sphi 0, %s290
      %s291 = sphi 0, %s288
      %s292 = sphi 0, %s291
      %s308 = sphi 0, %s292
    $region4: #{tpu_custom_call.1} parent=1 // loop_header_branch
      %28 = sbr.rel (%p26) target = $region8
    $region5: #{tpu_custom_call.1} parent=1 // loop_body
      %s30 = ssub.s32 %s25, 1
      %s31 = ssub.s32 %s25, 2
      %s41 = sadd.s32 1, %s34
      %p42 = scmp.ge.s32.totalorder %s41, 2
      %s43 = scalar_select %p42, 0, %s41
      %s44 = sadd.s32 1, %s33
      %s45 = scalar_select %p42, %s44, %s33
      %p46 = scmp.ge.s32.totalorder %s45, 2
      %s47 = scalar_select %p46, 0, %s45
      %s48 = sadd.s32 1, %s32
      %s49 = scalar_select %p46, %s48, %s32
      %p50 = scmp.ge.s32.totalorder %s49, 2
      %s51 = scalar_select %p50, 0, %s49
      %s52 = ssub.s32 1, %s33
      %s53 = smul.u32 %s34, %s52
      %s54 = sadd.s32 %s53, %s33
      %s55 = ssub.s32 1, %s47
      %s56 = smul.u32 %s43, %s55
      %s57 = sadd.s32 %s56, %s47
      %s58 = ssub.s32 %s32, %s51
      %s59 = ssub.s32 %s54, %s57
      %s60 = sor.u32 %s58, %s59
      %p61 = scmp.eq.s32.totalorder %s60, 0
      %s63 = sadd.s32 %s62, 1
      %s64 = scalar_select %p61, %s62, %s63
      %p67 = pneg %p61
      %p68 = scmp.eq.s32.totalorder %s25, 7
      %p69 = por %p67, %p68
      %p70 = scmp.ne.s32.totalorder %s62, %s65
      %p71 = scmp.eq.s32.totalorder %s25, 0
      %p72 = por %p70, %p71
      %p73 = scmp.ne.s32.totalorder %s62, %s65
      %p74 = scmp.eq.s32.totalorder %s30, 7
      %p75 = por %p73, %p74
      %p76 = scmp.ne.s32.totalorder %s65, %s66
      %p77 = scmp.eq.s32.totalorder %s30, 0
      %p78 = por %p76, %p77
      %p79 = scmp.ne.s32.totalorder %s65, %s66
      %p80 = scmp.eq.s32.totalorder %s31, 7
      %p81 = por %p79, %p80
      %p83 = scmp.ne.s32.totalorder %s66, %s82
      %p84 = scmp.eq.s32.totalorder %s31, 0
      %p85 = por %p83, %p84
      %s86 = ssub.s32 %s32, %s51
      %s87 = ssub.s32 %s34, %s43
      %s88 = sor.u32 %s86, %s87
      %p89 = scmp.eq.s32.totalorder %s88, 0
      %s91 = sadd.s32 %s90, 1
      %s92 = scalar_select %p89, %s90, %s91
      %p95 = pneg %p89
      %p96 = scmp.eq.s32.totalorder %s25, 7
      %p97 = por %p95, %p96
      %p98 = scmp.ne.s32.totalorder %s90, %s93
      %p99 = scmp.eq.s32.totalorder %s25, 0
      %p100 = por %p98, %p99
      %p101 = scmp.ne.s32.totalorder %s90, %s93
      %p102 = scmp.eq.s32.totalorder %s30, 7
      %p103 = por %p101, %p102
      %p104 = scmp.ne.s32.totalorder %s93, %s94
      %p105 = scmp.eq.s32.totalorder %s30, 0
      %p106 = por %p104, %p105
      %p107 = scmp.ne.s32.totalorder %s93, %s94
      %p108 = scmp.eq.s32.totalorder %s31, 7
      %p109 = por %p107, %p108
      %p111 = scmp.ne.s32.totalorder %s94, %s110
      %p112 = scmp.eq.s32.totalorder %s31, 0
      %p113 = por %p111, %p112
      %s115 = sadd.s32 %s114, 1
      %p118 = scmp.eq.s32.totalorder %s25, 7
      %p119 = scmp.ne.s32.totalorder %s114, %s116
      %p120 = scmp.eq.s32.totalorder %s25, 0
      %p121 = por %p119, %p120
      %p122 = scmp.ne.s32.totalorder %s114, %s116
      %p123 = scmp.eq.s32.totalorder %s30, 7
      %p124 = por %p122, %p123
      %p125 = scmp.ne.s32.totalorder %s116, %s117
      %p126 = scmp.eq.s32.totalorder %s30, 0
      %p127 = por %p125, %p126
      %p128 = scmp.ne.s32.totalorder %s116, %s117
      %p129 = scmp.eq.s32.totalorder %s31, 7
      %p130 = por %p128, %p129
      %p132 = scmp.ne.s32.totalorder %s117, %s131
      %p133 = scmp.eq.s32.totalorder %s31, 0
      %p134 = por %p132, %p133
      %s136 = sadd.s32 %s135, 1
      %p139 = scmp.eq.s32.totalorder %s25, 7
      %p140 = scmp.ne.s32.totalorder %s135, %s137
      %p141 = scmp.eq.s32.totalorder %s25, 0
      %p142 = por %p140, %p141
      %p143 = scmp.ne.s32.totalorder %s135, %s137
      %p144 = scmp.eq.s32.totalorder %s30, 7
      %p145 = por %p143, %p144
      %p146 = scmp.ne.s32.totalorder %s137, %s138
      %p147 = scmp.eq.s32.totalorder %s30, 0
      %p148 = por %p146, %p147
      %p149 = scmp.ne.s32.totalorder %s137, %s138
      %p150 = scmp.eq.s32.totalorder %s31, 7
      %p151 = por %p149, %p150
      %p153 = scmp.ne.s32.totalorder %s138, %s152
      %p154 = scmp.eq.s32.totalorder %s31, 0
      %p155 = por %p153, %p154
      %s157 = sadd.s32 %s156, 1
      %p160 = scmp.eq.s32.totalorder %s25, 7
      %p161 = scmp.ne.s32.totalorder %s156, %s158
      %p162 = scmp.eq.s32.totalorder %s25, 0
      %p163 = por %p161, %p162
      %p164 = scmp.ne.s32.totalorder %s156, %s158
      %p165 = scmp.eq.s32.totalorder %s30, 7
      %p166 = por %p164, %p165
      %p167 = scmp.ne.s32.totalorder %s158, %s159
      %p168 = scmp.eq.s32.totalorder %s30, 0
      %p169 = por %p167, %p168
      %p170 = scmp.ne.s32.totalorder %s158, %s159
      %p171 = scmp.eq.s32.totalorder %s31, 7
      %p172 = por %p170, %p171
      %p174 = scmp.ne.s32.totalorder %s159, %s173
      %p175 = scmp.eq.s32.totalorder %s31, 0
      %p176 = por %p174, %p175
      %s178 = sadd.s32 %s177, 1
      %p181 = scmp.eq.s32.totalorder %s25, 7
      %p182 = scmp.ne.s32.totalorder %s177, %s179
      %p183 = scmp.eq.s32.totalorder %s25, 0
      %p184 = por %p182, %p183
      %p185 = scmp.ne.s32.totalorder %s177, %s179
      %p186 = scmp.eq.s32.totalorder %s30, 7
      %p187 = por %p185, %p186
      %p188 = scmp.ne.s32.totalorder %s179, %s180
      %p189 = scmp.eq.s32.totalorder %s30, 0
      %p190 = por %p188, %p189
      %p191 = scmp.ne.s32.totalorder %s179, %s180
      %p192 = scmp.eq.s32.totalorder %s31, 7
      %p193 = por %p191, %p192
      %p195 = scmp.ne.s32.totalorder %s180, %s194
      %p196 = scmp.eq.s32.totalorder %s31, 0
      %p197 = por %p195, %p196
      %s199 = sadd.s32 %s198, 1
      %p202 = scmp.eq.s32.totalorder %s25, 7
      %p203 = scmp.ne.s32.totalorder %s198, %s200
      %p204 = scmp.eq.s32.totalorder %s25, 0
      %p205 = por %p203, %p204
      %p206 = scmp.ne.s32.totalorder %s198, %s200
      %p207 = scmp.eq.s32.totalorder %s30, 7
      %p208 = por %p206, %p207
      %p209 = scmp.ne.s32.totalorder %s200, %s201
      %p210 = scmp.eq.s32.totalorder %s30, 0
      %p211 = por %p209, %p210
      %p212 = scmp.ne.s32.totalorder %s200, %s201
      %p213 = scmp.eq.s32.totalorder %s31, 7
      %p214 = por %p212, %p213
      %p216 = scmp.ne.s32.totalorder %s201, %s215
      %p217 = scmp.eq.s32.totalorder %s31, 0
      %p218 = por %p216, %p217
      %s220 = sadd.s32 %s219, 1
      %p223 = scmp.eq.s32.totalorder %s25, 7
      %p224 = scmp.ne.s32.totalorder %s219, %s221
      %p225 = scmp.eq.s32.totalorder %s25, 0
      %p226 = por %p224, %p225
      %p227 = scmp.ne.s32.totalorder %s219, %s221
      %p228 = scmp.eq.s32.totalorder %s30, 7
      %p229 = por %p227, %p228
      %p230 = scmp.ne.s32.totalorder %s221, %s222
      %p231 = scmp.eq.s32.totalorder %s30, 0
      %p232 = por %p230, %p231
      %p233 = scmp.ne.s32.totalorder %s221, %s222
      %p234 = scmp.eq.s32.totalorder %s31, 7
      %p235 = por %p233, %p234
      %p237 = scmp.ne.s32.totalorder %s222, %s236
      %p238 = scmp.eq.s32.totalorder %s31, 0
      %p239 = por %p237, %p238
      %s241 = sadd.s32 %s240, 1
      %p244 = scmp.eq.s32.totalorder %s25, 7
      %p245 = scmp.ne.s32.totalorder %s240, %s242
      %p246 = scmp.eq.s32.totalorder %s25, 0
      %p247 = por %p245, %p246
      %p248 = scmp.ne.s32.totalorder %s240, %s242
      %p249 = scmp.eq.s32.totalorder %s30, 7
      %p250 = por %p248, %p249
      %p251 = scmp.ne.s32.totalorder %s242, %s243
      %p252 = scmp.eq.s32.totalorder %s30, 0
      %p253 = por %p251, %p252
      %p254 = scmp.ne.s32.totalorder %s242, %s243
      %p255 = scmp.eq.s32.totalorder %s31, 7
      %p256 = por %p254, %p255
      %p258 = scmp.ne.s32.totalorder %s243, %s257
      %p259 = scmp.eq.s32.totalorder %s31, 0
      %p260 = por %p258, %p259
      %s262 = sadd.s32 %s261, 1
      %p265 = scmp.eq.s32.totalorder %s25, 7
      %p266 = scmp.ne.s32.totalorder %s261, %s263
      %p267 = scmp.eq.s32.totalorder %s25, 0
      %p268 = por %p266, %p267
      %p269 = scmp.ne.s32.totalorder %s261, %s263
      %p270 = scmp.eq.s32.totalorder %s30, 7
      %p271 = por %p269, %p270
      %p272 = scmp.ne.s32.totalorder %s263, %s264
      %p273 = scmp.eq.s32.totalorder %s30, 0
      %p274 = por %p272, %p273
      %p275 = scmp.ne.s32.totalorder %s263, %s264
      %p276 = scmp.eq.s32.totalorder %s31, 7
      %p277 = por %p275, %p276
      %p279 = scmp.ne.s32.totalorder %s264, %s278
      %p280 = scmp.eq.s32.totalorder %s31, 0
      %p281 = por %p279, %p280
      %s282 = smul.u32 %s34, %s33
      %s283 = smul.u32 %s43, %s47
      %s284 = ssub.s32 %s32, %s51
      %s285 = ssub.s32 %s282, %s283
      %s286 = sor.u32 %s284, %s285
      %p287 = scmp.eq.s32.totalorder %s286, 0
      %s289 = sadd.s32 %s288, 1
      %s290 = scalar_select %p287, %s288, %s289
      %p293 = pneg %p287
      %p294 = scmp.eq.s32.totalorder %s25, 7
      %p295 = por %p293, %p294
      %p296 = scmp.ne.s32.totalorder %s288, %s291
      %p297 = scmp.eq.s32.totalorder %s25, 0
      %p298 = por %p296, %p297
      %p299 = scmp.ne.s32.totalorder %s288, %s291
      %p300 = scmp.eq.s32.totalorder %s30, 7
      %p301 = por %p299, %p300
      %p302 = scmp.ne.s32.totalorder %s291, %s292
      %p303 = scmp.eq.s32.totalorder %s30, 0
      %p304 = por %p302, %p303
      %p305 = scmp.ne.s32.totalorder %s291, %s292
      %p306 = scmp.eq.s32.totalorder %s31, 7
      %p307 = por %p305, %p306
      %p309 = scmp.ne.s32.totalorder %s292, %s308
      %p310 = scmp.eq.s32.totalorder %s31, 0
      %p311 = por %p309, %p310
      %p312 = scmp.le.s32.totalorder 1, %s25
      %p313 = scmp.lt.s32.totalorder %s25, 9
      %p314 = pnand %p312, %p313
      %p315 = pneg %p314
      // Predicated region
      $region9: #{tpu_custom_call.1} parent=5 // pred_check
        _
      $region10: #{tpu_custom_call.1} parent=5 // pred_check_branch
        %317 = sbr.rel (%p314) target = $region12
      $region11: #{tpu_custom_call.1} parent=5 // pred_region
        %s318 = ssub.s32 %s25, 1
        // Predicated region
        $region13: #{tpu_custom_call.1} parent=11 // pred_check
          %p319 = pneg %p127
        $region14: #{tpu_custom_call.1} parent=11 // pred_check_branch
          %321 = sbr.rel (%p319) target = $region16
        $region15: #{tpu_custom_call.1} parent=11 // pred_region
          _
        $region16: #{tpu_custom_call.1} parent=11 // pred_fallthru
          _
        // Predicated region
        $region17: #{tpu_custom_call.1} parent=11 // pred_check
          %p322 = pneg %p148
        $region18: #{tpu_custom_call.1} parent=11 // pred_check_branch
          %324 = sbr.rel (%p322) target = $region20
        $region19: #{tpu_custom_call.1} parent=11 // pred_region
          _
        $region20: #{tpu_custom_call.1} parent=11 // pred_fallthru
          _
        // Predicated region
        $region21: #{tpu_custom_call.1} parent=11 // pred_check
          %p325 = pneg %p169
        $region22: #{tpu_custom_call.1} parent=11 // pred_check_branch
          %327 = sbr.rel (%p325) target = $region24
        $region23: #{tpu_custom_call.1} parent=11 // pred_region
          _
        $region24: #{tpu_custom_call.1} parent=11 // pred_fallthru
          _
        // Predicated region
        $region25: #{tpu_custom_call.1} parent=11 // pred_check
          %p328 = pneg %p190
        $region26: #{tpu_custom_call.1} parent=11 // pred_check_branch
          %330 = sbr.rel (%p328) target = $region28
        $region27: #{tpu_custom_call.1} parent=11 // pred_region
          _
        $region28: #{tpu_custom_call.1} parent=11 // pred_fallthru
          _
        // Predicated region
        $region29: #{tpu_custom_call.1} parent=11 // pred_check
          %p331 = pneg %p211
        $region30: #{tpu_custom_call.1} parent=11 // pred_check_branch
          %333 = sbr.rel (%p331) target = $region32
        $region31: #{tpu_custom_call.1} parent=11 // pred_region
          _
        $region32: #{tpu_custom_call.1} parent=11 // pred_fallthru
          _
        // Predicated region
        $region33: #{tpu_custom_call.1} parent=11 // pred_check
          %p334 = pneg %p232
        $region34: #{tpu_custom_call.1} parent=11 // pred_check_branch
          %336 = sbr.rel (%p334) target = $region36
        $region35: #{tpu_custom_call.1} parent=11 // pred_region
          _
        $region36: #{tpu_custom_call.1} parent=11 // pred_fallthru
          _
        // Predicated region
        $region37: #{tpu_custom_call.1} parent=11 // pred_check
          %p337 = pneg %p253
        $region38: #{tpu_custom_call.1} parent=11 // pred_check_branch
          %339 = sbr.rel (%p337) target = $region40
        $region39: #{tpu_custom_call.1} parent=11 // pred_region
          _
        $region40: #{tpu_custom_call.1} parent=11 // pred_fallthru
          _
        // Predicated region
        $region41: #{tpu_custom_call.1} parent=11 // pred_check
          %p340 = pneg %p274
        $region42: #{tpu_custom_call.1} parent=11 // pred_check_branch
          %342 = sbr.rel (%p340) target = $region44
        $region43: #{tpu_custom_call.1} parent=11 // pred_region
          _
        $region44: #{tpu_custom_call.1} parent=11 // pred_fallthru
          _
      $region12: #{tpu_custom_call.1} parent=5 // pred_fallthru
        _
      %p343 = scmp.lt.s32.totalorder %s25, 8
      // Predicated region
      $region45: #{tpu_custom_call.1} parent=5 // pred_check
        %p344 = pneg %p343
      $region46: #{tpu_custom_call.1} parent=5 // pred_check_branch
        %346 = sbr.rel (%p344) target = $region48
      $region47: #{tpu_custom_call.1} parent=5 // pred_region
        // Predicated region
        $region49: #{tpu_custom_call.1} parent=47 // pred_check
          %p347 = pneg %p72
        $region50: #{tpu_custom_call.1} parent=47 // pred_check_branch
          %349 = sbr.rel (%p347) target = $region52
        $region51: #{tpu_custom_call.1} parent=47 // pred_region
          %s350 = sand.u32 %s62, 1
          %s351 = scalar_lea.sflag [#allocation6], %s350
          %s352 = sand.u32 %s62, 1
          %s353 = smul.addr %s352, 64
          %s354 = scalar_lea.vmem [#allocation5], %s353
          %s355 = ssub.s32 1, %s33
          %s356 = smul.u32 %s34, %s355
          %s357 = sadd.s32 %s356, %s33
          %s359 = ssub.s32 1024, 1024
          %360 = vsyncadd %s351, %s359
          %s361 = smul.addr %s32, 16
          %s362 = sadd.s32 %s357, %s361
          %s363 = smul.addr %s362, 128
          %s364 = scalar_lea.hbm %s0, %s363
          %s365 = sshll.u32 %s354, 4
          %s366 = int_to_ptr.vmem [resolvable:$true] %s365
          %371 = dma.hbm_to_vmem [thread:$0]  %s364, 1024, %s366, %s351, 256, 128, 8
        $region52: #{tpu_custom_call.1} parent=47 // pred_fallthru
          _
        // Predicated region
        $region53: #{tpu_custom_call.1} parent=47 // pred_check
          %p372 = pneg %p100
        $region54: #{tpu_custom_call.1} parent=47 // pred_check_branch
          %374 = sbr.rel (%p372) target = $region56
        $region55: #{tpu_custom_call.1} parent=47 // pred_region
          %s375 = sand.u32 %s90, 1
          %s376 = scalar_lea.sflag [#allocation9], %s375
          %s377 = sand.u32 %s90, 1
          %s378 = smul.addr %s377, 64
          %s379 = scalar_lea.vmem [#allocation8], %s378
          %s381 = ssub.s32 1024, 1024
          %382 = vsyncadd %s376, %s381
          %s383 = smul.addr %s32, 16
          %s384 = sadd.s32 %s34, %s383
          %s385 = smul.addr %s384, 128
          %s386 = scalar_lea.hbm %s1, %s385
          %s387 = sshll.u32 %s379, 4
          %s388 = int_to_ptr.vmem [resolvable:$true] %s387
          %393 = dma.hbm_to_vmem [thread:$0]  %s386, 1024, %s388, %s376, 256, 128, 8
        $region56: #{tpu_custom_call.1} parent=47 // pred_fallthru
          _
      $region48: #{tpu_custom_call.1} parent=5 // pred_fallthru
        _
      %p394 = scmp.le.s32.totalorder 1, %s25
      %p395 = scmp.lt.s32.totalorder %s25, 9
      %p396 = pnand %p394, %p395
      %p397 = pneg %p396
      // Predicated region
      $region57: #{tpu_custom_call.1} parent=5 // pred_check
        _
      $region58: #{tpu_custom_call.1} parent=5 // pred_check_branch
        %399 = sbr.rel (%p396) target = $region60
      $region59: #{tpu_custom_call.1} parent=5 // pred_region
        %s400 = ssub.s32 %s25, 1
        %s401 = sand.u32 %s65, 1
        %s402 = scalar_lea.sflag [#allocation6], %s401
        %s403 = sand.u32 %s65, 1
        %s404 = smul.addr %s403, 64
        %s405 = scalar_lea.vmem [#allocation5], %s404
        // Predicated region
        $region61: #{tpu_custom_call.1} parent=59 // pred_check
          %p406 = pneg %p78
        $region62: #{tpu_custom_call.1} parent=59 // pred_check_branch
          %408 = sbr.rel (%p406) target = $region64
        $region63: #{tpu_custom_call.1} parent=59 // pred_region
          %409 = dma.done %s402, 1024
        $region64: #{tpu_custom_call.1} parent=59 // pred_fallthru
          _
        %s410 = sand.u32 %s93, 1
        %s411 = scalar_lea.sflag [#allocation9], %s410
        %s412 = sand.u32 %s93, 1
        %s413 = smul.addr %s412, 64
        %s414 = scalar_lea.vmem [#allocation8], %s413
        // Predicated region
        $region65: #{tpu_custom_call.1} parent=59 // pred_check
          %p415 = pneg %p106
        $region66: #{tpu_custom_call.1} parent=59 // pred_check_branch
          %417 = sbr.rel (%p415) target = $region68
        $region67: #{tpu_custom_call.1} parent=59 // pred_region
          %418 = dma.done %s411, 1024
        $region68: #{tpu_custom_call.1} parent=59 // pred_fallthru
          _
        %s419 = sand.u32 %s65, 1
        %s420 = scalar_lea.sflag [#allocation6], %s419
        %s421 = sand.u32 %s65, 1
        %s422 = smul.addr %s421, 64
        %s423 = scalar_lea.vmem [#allocation5], %s422
        %p424 = pneg %p78
        %p425 = pneg %p75
        %s426 = sand.u32 %s93, 1
        %s427 = scalar_lea.sflag [#allocation9], %s426
        %s428 = sand.u32 %s93, 1
        %s429 = smul.addr %s428, 64
        %s430 = scalar_lea.vmem [#allocation8], %s429
        %p431 = pneg %p106
        %p432 = pneg %p103
        %p433 = pneg %p127
        %p434 = pneg %p124
        %p435 = pneg %p148
        %p436 = pneg %p145
        %p437 = pneg %p169
        %p438 = pneg %p166
        %p439 = pneg %p190
        %p440 = pneg %p187
        %p441 = pneg %p211
        %p442 = pneg %p208
        %p443 = pneg %p232
        %p444 = pneg %p229
        %p445 = pneg %p253
        %p446 = pneg %p250
        %p447 = pneg %p274
        %p448 = pneg %p271
        %p449 = pneg %p304
        %p450 = pneg %p301
        %s451 = sand.u32 %s291, 1
        %s452 = scalar_lea.sflag [#allocation7], %s451
        %s453 = sand.u32 %s291, 1
        %s454 = smul.addr %s453, 32
        %s455 = scalar_lea.vmem [#allocation10], %s454
        %s456 = ssub.s32 1, %s36
        %s457 = smul.u32 %s37, %s456
        %s458 = sadd.s32 %s457, %s36
        %s459 = smul.u32 %s37, %s36
        %p461 = scmp.eq.s32.totalorder %s36, 0
        // Predicated region
        $region69: #{tpu_custom_call.1} parent=59 // pred_check
          %p462 = pneg %p461
        $region70: #{tpu_custom_call.1} parent=59 // pred_check_branch
          %464 = sbr.rel (%p462) target = $region72
        $region71: #{tpu_custom_call.1} parent=59 // pred_region
          %p465 = scmp.eq.s32.totalorder %s37, 0
          // Predicated region
          $region73: #{tpu_custom_call.1} parent=71 // pred_check
            %p466 = pneg %p465
          $region74: #{tpu_custom_call.1} parent=71 // pred_check_branch
            %468 = sbr.rel (%p466) target = $region76
          $region75: #{tpu_custom_call.1} parent=71 // pred_region
            %vm469 = vcmask 130048
            %470 = vst.msk [vmem:[#allocation2] sm:$0xff] %vm469, 0.0
            %471 = vst.msk [vmem:[#allocation2 + $0x8] sm:$0xff] %vm469, 0.0
            %472 = vst.msk [vmem:[#allocation2 + $0x10] sm:$0xff] %vm469, 0.0
            %473 = vst.msk [vmem:[#allocation2 + $0x18] sm:$0xff] %vm469, 0.0
            %474 = vst.msk [vmem:[#allocation2 + $0x20] sm:$0xff] %vm469, 0.0
            %475 = vst.msk [vmem:[#allocation2 + $0x28] sm:$0xff] %vm469, 0.0
            %476 = vst.msk [vmem:[#allocation2 + $0x30] sm:$0xff] %vm469, 0.0
            %477 = vst.msk [vmem:[#allocation2 + $0x38] sm:$0xff] %vm469, 0.0
          $region76: #{tpu_custom_call.1} parent=71 // pred_fallthru
            _
          %v478 = vld [vmem:[%s414] sm:$0xff]
          %v479 = vld [vmem:[%s414 + $0x8] sm:$0xff]
          %v480 = vld [vmem:[%s414 + $0x10] sm:$0xff]
          %v481 = vld [vmem:[%s414 + $0x18] sm:$0xff]
          %v482 = vld [vmem:[%s414 + $0x20] sm:$0xff]
          %v483 = vld [vmem:[%s414 + $0x28] sm:$0xff]
          %v484 = vld [vmem:[%s414 + $0x30] sm:$0xff]
          %v485 = vld [vmem:[%s414 + $0x38] sm:$0xff]
          %v486 = vpack.c.bf16 %v479, %v478
          %v487 = vpack.c.bf16 %v481, %v480
          %v488 = vpack.c.bf16 %v483, %v482
          %v489 = vpack.c.bf16 %v485, %v484
          %v490 = vld [vmem:[%s405] sm:$0xff]
          %v491 = vld [vmem:[%s405 + $0x8] sm:$0xff]
          %v492 = vld [vmem:[%s405 + $0x10] sm:$0xff]
          %v493 = vld [vmem:[%s405 + $0x18] sm:$0xff]
          %v494 = vld [vmem:[%s405 + $0x20] sm:$0xff]
          %v495 = vld [vmem:[%s405 + $0x28] sm:$0xff]
          %v496 = vld [vmem:[%s405 + $0x30] sm:$0xff]
          %v497 = vld [vmem:[%s405 + $0x38] sm:$0xff]
          %v498 = vpack.c.bf16 %v491, %v490
          %v499 = vpack.c.bf16 %v493, %v492
          %v500 = vpack.c.bf16 %v495, %v494
          %v501 = vpack.c.bf16 %v497, %v496
          %v502 = vld [vmem:[%s2] sm:$0xf]
          %v503 = vld [vmem:[%s2 + $0x4] sm:$0xf]
          %v504 = vld [vmem:[%s2 + $0x8] sm:$0xf]
          %v505 = vld [vmem:[%s2 + $0xc] sm:$0xf]
          %v506 = vld [vmem:[%s2 + $0x10] sm:$0xf]
          %v507 = vld [vmem:[%s2 + $0x14] sm:$0xf]
          %v508 = vld [vmem:[%s2 + $0x18] sm:$0xf]
          %v509 = vld [vmem:[%s2 + $0x1c] sm:$0xf]
          %v510 = vld [vmem:[%s3] sm:$0xff]
          %v511 = vld [vmem:[%s3 + $0x8] sm:$0xff]
          %v512 = vld [vmem:[%s3 + $0x10] sm:$0xff]
          %v513 = vld [vmem:[%s3 + $0x18] sm:$0xff]
          %v514 = vld [vmem:[%s3 + $0x20] sm:$0xff]
          %v515 = vld [vmem:[%s3 + $0x28] sm:$0xff]
          %v516 = vld [vmem:[%s3 + $0x30] sm:$0xff]
          %v517 = vld [vmem:[%s3 + $0x38] sm:$0xff]
          %519 = vset.pattern.permute.xlu0 0
          %520 = vperm.xlu0 %519, %v510
          %v521 = vpop.permute.xlu0 %520
          %524 = vset.pattern.permute.xlu0 0
          %525 = vperm.xlu0 %524, %v511
          %v526 = vpop.permute.xlu0 %525
          %529 = vset.pattern.permute.xlu0 0
          %530 = vperm.xlu0 %529, %v512
          %v531 = vpop.permute.xlu0 %530
          %534 = vset.pattern.permute.xlu0 0
          %535 = vperm.xlu0 %534, %v513
          %v536 = vpop.permute.xlu0 %535
          %539 = vset.pattern.permute.xlu0 0
          %540 = vperm.xlu0 %539, %v514
          %v541 = vpop.permute.xlu0 %540
          %544 = vset.pattern.permute.xlu0 0
          %545 = vperm.xlu0 %544, %v515
          %v546 = vpop.permute.xlu0 %545
          %549 = vset.pattern.permute.xlu0 0
          %550 = vperm.xlu0 %549, %v516
          %v551 = vpop.permute.xlu0 %550
          %554 = vset.pattern.permute.xlu0 0
          %555 = vperm.xlu0 %554, %v517
          %v556 = vpop.permute.xlu0 %555
          %v566 = vunpack.c.l.b16 %v502
          %v567 = vunpack.c.l.b16 %v503
          %v568 = vunpack.c.l.b16 %v504
          %v569 = vunpack.c.l.b16 %v505
          %v570 = vunpack.c.l.b16 %v506
          %v571 = vunpack.c.l.b16 %v507
          %v572 = vunpack.c.l.b16 %v508
          %v573 = vunpack.c.l.b16 %v509
          %v574 = vpack.c.b16 %v567, %v566
          %v575 = vpack.c.b16 %v569, %v568
          %v576 = vpack.c.b16 %v571, %v570
          %v577 = vpack.c.b16 %v573, %v572
          %vm578 = vcmask 523264
          %v580 = vsel %vm578, %v574, 0
          %v583 = vsel %vm578, %v575, 0
          %v586 = vsel %vm578, %v576, 0
          %v589 = vsel %vm578, %v577, 0
          %591 = vmatprep.subr.bf16.mxu0 0
          %592 = vmatpush1.bf16.msra.mxu0 %v498
          %593 = vmatprep.subr.bf16.mxu0 0
          %594 = vmatpush1.bf16.msra.mxu0 %v499
          %595 = vmatprep.subr.bf16.mxu0 0
          %596 = vmatpush1.bf16.msra.mxu0 %v500
          %597 = vmatprep.subr.bf16.mxu0 0
          %598 = vmatpush1.bf16.msra.mxu0 %v501
          %599 = vmatprep.subr.bf16.mxu0 0
          %600 = vmatpush1.bf16.msra.mxu0 0
          %601 = vmatprep.subr.bf16.mxu0 0
          %602 = vmatpush1.bf16.msra.mxu0 0
          %603 = vmatprep.subr.bf16.mxu0 0
          %604 = vmatpush1.bf16.msra.mxu0 0
          %605 = vmatprep.subr.bf16.mxu0 0
          %606 = vmatpush1.bf16.msra.mxu0 0
          %607 = vmatprep.subr.bf16.mxu0 0
          %608 = vmatpush1.bf16.msra.mxu0 0
          %609 = vmatprep.subr.bf16.mxu0 0
          %610 = vmatpush1.bf16.msra.mxu0 0
          %611 = vmatprep.subr.bf16.mxu0 0
          %612 = vmatpush1.bf16.msra.mxu0 0
          %613 = vmatprep.subr.bf16.mxu0 0
          %614 = vmatpush1.bf16.msra.mxu0 0
          %615 = vmatprep.subr.bf16.mxu0 0
          %616 = vmatpush1.bf16.msra.mxu0 0
          %617 = vmatprep.subr.bf16.mxu0 0
          %618 = vmatpush1.bf16.msra.mxu0 0
          %619 = vmatprep.subr.bf16.mxu0 0
          %620 = vmatpush1.bf16.msra.mxu0 0
          %621 = vmatprep.subr.bf16.mxu0 0
          %622 = vmatpush1.bf16.msra.mxu0 0
          %623 = vmatprep.mubr.bf16.mxu0 0
          %624 = vmatmul.mubr.bf16.gmra.mrb[0].mxu0 %v580
          %v625 = vpop.f32.mrb[0].mxu0
          %v626 = vadd.f32 %v521, %v625
          %v627 = vpop.f32.mrb[0].mxu0
          %v628 = vpop.f32.mrb[0].mxu0
          %v629 = vadd.f32 %v526, %v628
          %v630 = vpop.f32.mrb[0].mxu0
          %631 = vmatprep.mubr.bf16.mxu0 0
          %632 = vmatmul.mubr.bf16.gmra.mrb[0].mxu0 %v583
          %v633 = vpop.f32.mrb[0].mxu0
          %v634 = vadd.f32 %v531, %v633
          %v635 = vpop.f32.mrb[0].mxu0
          %v636 = vpop.f32.mrb[0].mxu0
          %v637 = vadd.f32 %v536, %v636
          %v638 = vpop.f32.mrb[0].mxu0
          %639 = vmatprep.mubr.bf16.mxu0 0
          %640 = vmatmul.mubr.bf16.gmra.mrb[0].mxu0 %v586
          %v641 = vpop.f32.mrb[0].mxu0
          %v642 = vadd.f32 %v541, %v641
          %v643 = vpop.f32.mrb[0].mxu0
          %v644 = vpop.f32.mrb[0].mxu0
          %v645 = vadd.f32 %v546, %v644
          %v646 = vpop.f32.mrb[0].mxu0
          %647 = vmatprep.mubr.bf16.mxu0 0
          %648 = vmatmul.mubr.bf16.gmra.mrb[0].mxu0 %v589
          %v649 = vpop.f32.mrb[0].mxu0
          %v650 = vadd.f32 %v551, %v649
          %v651 = vpop.f32.mrb[0].mxu0
          %v652 = vpop.f32.mrb[0].mxu0
          %v653 = vadd.f32 %v556, %v652
          %v654 = vpop.f32.mrb[0].mxu0
          %655 = vdwg.mxu0
          %v656 = vpack.c.bf16 %v629, %v626
          %v657 = vpack.c.bf16 %v637, %v634
          %v658 = vpack.c.bf16 %v645, %v642
          %v659 = vpack.c.bf16 %v653, %v650
          %v660 = vld [vmem:[%s4] sm:$0xf]
          %v661 = vld [vmem:[%s4 + $0x4] sm:$0xf]
          %v662 = vld [vmem:[%s4 + $0x8] sm:$0xf]
          %v663 = vld [vmem:[%s4 + $0xc] sm:$0xf]
          %v664 = vld [vmem:[%s4 + $0x10] sm:$0xf]
          %v665 = vld [vmem:[%s4 + $0x14] sm:$0xf]
          %v666 = vld [vmem:[%s4 + $0x18] sm:$0xf]
          %v667 = vld [vmem:[%s4 + $0x1c] sm:$0xf]
          %v668 = vld [vmem:[%s5] sm:$0xff]
          %v669 = vld [vmem:[%s5 + $0x8] sm:$0xff]
          %v670 = vld [vmem:[%s5 + $0x10] sm:$0xff]
          %v671 = vld [vmem:[%s5 + $0x18] sm:$0xff]
          %v672 = vld [vmem:[%s5 + $0x20] sm:$0xff]
          %v673 = vld [vmem:[%s5 + $0x28] sm:$0xff]
          %v674 = vld [vmem:[%s5 + $0x30] sm:$0xff]
          %v675 = vld [vmem:[%s5 + $0x38] sm:$0xff]
          %677 = vset.pattern.permute.xlu0 0
          %678 = vperm.xlu0 %677, %v668
          %v679 = vpop.permute.xlu0 %678
          %682 = vset.pattern.permute.xlu0 0
          %683 = vperm.xlu0 %682, %v669
          %v684 = vpop.permute.xlu0 %683
          %687 = vset.pattern.permute.xlu0 0
          %688 = vperm.xlu0 %687, %v670
          %v689 = vpop.permute.xlu0 %688
          %692 = vset.pattern.permute.xlu0 0
          %693 = vperm.xlu0 %692, %v671
          %v694 = vpop.permute.xlu0 %693
          %697 = vset.pattern.permute.xlu0 0
          %698 = vperm.xlu0 %697, %v672
          %v699 = vpop.permute.xlu0 %698
          %702 = vset.pattern.permute.xlu0 0
          %703 = vperm.xlu0 %702, %v673
          %v704 = vpop.permute.xlu0 %703
          %707 = vset.pattern.permute.xlu0 0
          %708 = vperm.xlu0 %707, %v674
          %v709 = vpop.permute.xlu0 %708
          %712 = vset.pattern.permute.xlu0 0
          %713 = vperm.xlu0 %712, %v675
          %v714 = vpop.permute.xlu0 %713
          %v724 = vunpack.c.l.b16 %v660
          %v725 = vunpack.c.l.b16 %v661
          %v726 = vunpack.c.l.b16 %v662
          %v727 = vunpack.c.l.b16 %v663
          %v728 = vunpack.c.l.b16 %v664
          %v729 = vunpack.c.l.b16 %v665
          %v730 = vunpack.c.l.b16 %v666
          %v731 = vunpack.c.l.b16 %v667
          %v732 = vpack.c.b16 %v725, %v724
          %v733 = vpack.c.b16 %v727, %v726
          %v734 = vpack.c.b16 %v729, %v728
          %v735 = vpack.c.b16 %v731, %v730
          %v737 = vsel %vm578, %v732, 0
          %v740 = vsel %vm578, %v733, 0
          %v743 = vsel %vm578, %v734, 0
          %v746 = vsel %vm578, %v735, 0
          %748 = vmatprep.subr.bf16.mxu0 0
          %749 = vmatpush1.bf16.msra.mxu0 %v486
          %750 = vmatprep.subr.bf16.mxu0 0
          %751 = vmatpush1.bf16.msra.mxu0 %v487
          %752 = vmatprep.subr.bf16.mxu0 0
          %753 = vmatpush1.bf16.msra.mxu0 %v488
          %754 = vmatprep.subr.bf16.mxu0 0
          %755 = vmatpush1.bf16.msra.mxu0 %v489
          %756 = vmatprep.subr.bf16.mxu0 0
          %757 = vmatpush1.bf16.msra.mxu0 0
          %758 = vmatprep.subr.bf16.mxu0 0
          %759 = vmatpush1.bf16.msra.mxu0 0
          %760 = vmatprep.subr.bf16.mxu0 0
          %761 = vmatpush1.bf16.msra.mxu0 0
          %762 = vmatprep.subr.bf16.mxu0 0
          %763 = vmatpush1.bf16.msra.mxu0 0
          %764 = vmatprep.subr.bf16.mxu0 0
          %765 = vmatpush1.bf16.msra.mxu0 0
          %766 = vmatprep.subr.bf16.mxu0 0
          %767 = vmatpush1.bf16.msra.mxu0 0
          %768 = vmatprep.subr.bf16.mxu0 0
          %769 = vmatpush1.bf16.msra.mxu0 0
          %770 = vmatprep.subr.bf16.mxu0 0
          %771 = vmatpush1.bf16.msra.mxu0 0
          %772 = vmatprep.subr.bf16.mxu0 0
          %773 = vmatpush1.bf16.msra.mxu0 0
          %774 = vmatprep.subr.bf16.mxu0 0
          %775 = vmatpush1.bf16.msra.mxu0 0
          %776 = vmatprep.subr.bf16.mxu0 0
          %777 = vmatpush1.bf16.msra.mxu0 0
          %778 = vmatprep.subr.bf16.mxu0 0
          %779 = vmatpush1.bf16.msra.mxu0 0
          %780 = vmatprep.mubr.bf16.mxu0 0
          %781 = vmatmul.mubr.bf16.gmra.mrb[0].mxu0 %v737
          %v782 = vpop.f32.mrb[0].mxu0
          %v783 = vadd.f32 %v679, %v782
          %v784 = vpop.f32.mrb[0].mxu0
          %v785 = vpop.f32.mrb[0].mxu0
          %v786 = vadd.f32 %v684, %v785
          %v787 = vpop.f32.mrb[0].mxu0
          %788 = vmatprep.mubr.bf16.mxu0 0
          %789 = vmatmul.mubr.bf16.gmra.mrb[0].mxu0 %v740
          %v790 = vpop.f32.mrb[0].mxu0
          %v791 = vadd.f32 %v689, %v790
          %v792 = vpop.f32.mrb[0].mxu0
          %v793 = vpop.f32.mrb[0].mxu0
          %v794 = vadd.f32 %v694, %v793
          %v795 = vpop.f32.mrb[0].mxu0
          %796 = vmatprep.mubr.bf16.mxu0 0
          %797 = vmatmul.mubr.bf16.gmra.mrb[0].mxu0 %v743
          %v798 = vpop.f32.mrb[0].mxu0
          %v799 = vadd.f32 %v699, %v798
          %v800 = vpop.f32.mrb[0].mxu0
          %v801 = vpop.f32.mrb[0].mxu0
          %v802 = vadd.f32 %v704, %v801
          %v803 = vpop.f32.mrb[0].mxu0
          %804 = vmatprep.mubr.bf16.mxu0 0
          %805 = vmatmul.mubr.bf16.gmra.mrb[0].mxu0 %v746
          %v806 = vpop.f32.mrb[0].mxu0
          %v807 = vadd.f32 %v709, %v806
          %v808 = vpop.f32.mrb[0].mxu0
          %v809 = vpop.f32.mrb[0].mxu0
          %v810 = vadd.f32 %v714, %v809
          %v811 = vpop.f32.mrb[0].mxu0
          %812 = vdwg.mxu0
          %v813 = vpack.c.bf16 %v786, %v783
          %v814 = vpack.c.bf16 %v794, %v791
          %v815 = vpack.c.bf16 %v802, %v799
          %v816 = vpack.c.bf16 %v810, %v807
          %v817 = vld [vmem:[#allocation2] sm:$0xff]
          %v818 = vld [vmem:[#allocation2 + $0x8] sm:$0xff]
          %819 = vmatprep.subr.bf16.mxu0 0
          %820 = vmatpush1.bf16.xpose.msra.mxu0 %v813
          %821 = vmatprep.subr.bf16.mxu0 0
          %822 = vmatpush1.bf16.xpose.msra.mxu0 0
          %823 = vmatprep.subr.bf16.mxu0 0
          %824 = vmatpush1.bf16.xpose.msra.mxu0 0
          %825 = vmatprep.subr.bf16.mxu0 0
          %826 = vmatpush1.bf16.xpose.msra.mxu0 0
          %827 = vmatprep.subr.bf16.mxu0 0
          %828 = vmatpush1.bf16.xpose.msra.mxu0 0
          %829 = vmatprep.subr.bf16.mxu0 0
          %830 = vmatpush1.bf16.xpose.msra.mxu0 0
          %831 = vmatprep.subr.bf16.mxu0 0
          %832 = vmatpush1.bf16.xpose.msra.mxu0 0
          %833 = vmatprep.subr.bf16.mxu0 0
          %834 = vmatpush1.bf16.xpose.msra.mxu0 0
          %835 = vmatprep.subr.bf16.mxu0 0
          %836 = vmatpush1.bf16.xpose.msra.mxu0 0
          %837 = vmatprep.subr.bf16.mxu0 0
          %838 = vmatpush1.bf16.xpose.msra.mxu0 0
          %839 = vmatprep.subr.bf16.mxu0 0
          %840 = vmatpush1.bf16.xpose.msra.mxu0 0
          %841 = vmatprep.subr.bf16.mxu0 0
          %842 = vmatpush1.bf16.xpose.msra.mxu0 0
          %843 = vmatprep.subr.bf16.mxu0 0
          %844 = vmatpush1.bf16.xpose.msra.mxu0 0
          %845 = vmatprep.subr.bf16.mxu0 0
          %846 = vmatpush1.bf16.xpose.msra.mxu0 0
          %847 = vmatprep.subr.bf16.mxu0 0
          %848 = vmatpush1.bf16.xpose.msra.mxu0 0
          %849 = vmatprep.subr.bf16.mxu0 0
          %850 = vmatpush1.bf16.xpose.msra.mxu0 0
          %851 = vmatprep.mubr.bf16.mxu0 0
          %852 = vmatmul.mubr.bf16.gmra.mrb[0].mxu0 %v656
          %v853 = vpop.f32.mrb[0].mxu0
          %v854 = vadd.f32 0.0, %v853
          %v855 = vpop.f32.mrb[0].mxu0
          %v856 = vpop.f32.mrb[0].mxu0
          %v857 = vadd.f32 0.0, %v856
          %v858 = vpop.f32.mrb[0].mxu0
          %859 = vdwg.mxu0
          %v860 = vadd.f32 %v817, %v854
          %v861 = vadd.f32 %v818, %v857
          %vm862 = vcmask 130048
          %863 = vst.msk [vmem:[#allocation2] sm:$0xff] %vm862, %v860
          %864 = vst.msk [vmem:[#allocation2 + $0x8] sm:$0xff] %vm862, %v861
          %s865 = scalar_lea.vmem [#allocation2], 16
          %v866 = vld [vmem:[%s865] sm:$0xff]
          %v867 = vld [vmem:[%s865 + $0x8] sm:$0xff]
          %868 = vmatprep.subr.bf16.mxu0 0
          %869 = vmatpush1.bf16.xpose.msra.mxu0 %v814
          %870 = vmatprep.subr.bf16.mxu0 0
          %871 = vmatpush1.bf16.xpose.msra.mxu0 0
          %872 = vmatprep.subr.bf16.mxu0 0
          %873 = vmatpush1.bf16.xpose.msra.mxu0 0
          %874 = vmatprep.subr.bf16.mxu0 0
          %875 = vmatpush1.bf16.xpose.msra.mxu0 0
          %876 = vmatprep.subr.bf16.mxu0 0
          %877 = vmatpush1.bf16.xpose.msra.mxu0 0
          %878 = vmatprep.subr.bf16.mxu0 0
          %879 = vmatpush1.bf16.xpose.msra.mxu0 0
          %880 = vmatprep.subr.bf16.mxu0 0
          %881 = vmatpush1.bf16.xpose.msra.mxu0 0
          %882 = vmatprep.subr.bf16.mxu0 0
          %883 = vmatpush1.bf16.xpose.msra.mxu0 0
          %884 = vmatprep.subr.bf16.mxu0 0
          %885 = vmatpush1.bf16.xpose.msra.mxu0 0
          %886 = vmatprep.subr.bf16.mxu0 0
          %887 = vmatpush1.bf16.xpose.msra.mxu0 0
          %888 = vmatprep.subr.bf16.mxu0 0
          %889 = vmatpush1.bf16.xpose.msra.mxu0 0
          %890 = vmatprep.subr.bf16.mxu0 0
          %891 = vmatpush1.bf16.xpose.msra.mxu0 0
          %892 = vmatprep.subr.bf16.mxu0 0
          %893 = vmatpush1.bf16.xpose.msra.mxu0 0
          %894 = vmatprep.subr.bf16.mxu0 0
          %895 = vmatpush1.bf16.xpose.msra.mxu0 0
          %896 = vmatprep.subr.bf16.mxu0 0
          %897 = vmatpush1.bf16.xpose.msra.mxu0 0
          %898 = vmatprep.subr.bf16.mxu0 0
          %899 = vmatpush1.bf16.xpose.msra.mxu0 0
          %900 = vmatprep.mubr.bf16.mxu0 0
          %901 = vmatmul.mubr.bf16.gmra.mrb[0].mxu0 %v657
          %v902 = vpop.f32.mrb[0].mxu0
          %v903 = vadd.f32 0.0, %v902
          %v904 = vpop.f32.mrb[0].mxu0
          %v905 = vpop.f32.mrb[0].mxu0
          %v906 = vadd.f32 0.0, %v905
          %v907 = vpop.f32.mrb[0].mxu0
          %908 = vdwg.mxu0
          %v909 = vadd.f32 %v866, %v903
          %v910 = vadd.f32 %v867, %v906
          %911 = vst.msk [vmem:[%s865] sm:$0xff] %vm862, %v909
          %912 = vst.msk [vmem:[%s865 + $0x8] sm:$0xff] %vm862, %v910
          %s913 = scalar_lea.vmem [#allocation2], 32
          %v914 = vld [vmem:[%s913] sm:$0xff]
          %v915 = vld [vmem:[%s913 + $0x8] sm:$0xff]
          %916 = vmatprep.subr.bf16.mxu0 0
          %917 = vmatpush1.bf16.xpose.msra.mxu0 %v815
          %918 = vmatprep.subr.bf16.mxu0 0
          %919 = vmatpush1.bf16.xpose.msra.mxu0 0
          %920 = vmatprep.subr.bf16.mxu0 0
          %921 = vmatpush1.bf16.xpose.msra.mxu0 0
          %922 = vmatprep.subr.bf16.mxu0 0
          %923 = vmatpush1.bf16.xpose.msra.mxu0 0
          %924 = vmatprep.subr.bf16.mxu0 0
          %925 = vmatpush1.bf16.xpose.msra.mxu0 0
          %926 = vmatprep.subr.bf16.mxu0 0
          %927 = vmatpush1.bf16.xpose.msra.mxu0 0
          %928 = vmatprep.subr.bf16.mxu0 0
          %929 = vmatpush1.bf16.xpose.msra.mxu0 0
          %930 = vmatprep.subr.bf16.mxu0 0
          %931 = vmatpush1.bf16.xpose.msra.mxu0 0
          %932 = vmatprep.subr.bf16.mxu0 0
          %933 = vmatpush1.bf16.xpose.msra.mxu0 0
          %934 = vmatprep.subr.bf16.mxu0 0
          %935 = vmatpush1.bf16.xpose.msra.mxu0 0
          %936 = vmatprep.subr.bf16.mxu0 0
          %937 = vmatpush1.bf16.xpose.msra.mxu0 0
          %938 = vmatprep.subr.bf16.mxu0 0
          %939 = vmatpush1.bf16.xpose.msra.mxu0 0
          %940 = vmatprep.subr.bf16.mxu0 0
          %941 = vmatpush1.bf16.xpose.msra.mxu0 0
          %942 = vmatprep.subr.bf16.mxu0 0
          %943 = vmatpush1.bf16.xpose.msra.mxu0 0
          %944 = vmatprep.subr.bf16.mxu0 0
          %945 = vmatpush1.bf16.xpose.msra.mxu0 0
          %946 = vmatprep.subr.bf16.mxu0 0
          %947 = vmatpush1.bf16.xpose.msra.mxu0 0
          %948 = vmatprep.mubr.bf16.mxu0 0
          %949 = vmatmul.mubr.bf16.gmra.mrb[0].mxu0 %v658
          %v950 = vpop.f32.mrb[0].mxu0
          %v951 = vadd.f32 0.0, %v950
          %v952 = vpop.f32.mrb[0].mxu0
          %v953 = vpop.f32.mrb[0].mxu0
          %v954 = vadd.f32 0.0, %v953
          %v955 = vpop.f32.mrb[0].mxu0
          %956 = vdwg.mxu0
          %v957 = vadd.f32 %v914, %v951
          %v958 = vadd.f32 %v915, %v954
          %959 = vst.msk [vmem:[%s913] sm:$0xff] %vm862, %v957
          %960 = vst.msk [vmem:[%s913 + $0x8] sm:$0xff] %vm862, %v958
          %s961 = scalar_lea.vmem [#allocation2], 48
          %v962 = vld [vmem:[%s961] sm:$0xff]
          %v963 = vld [vmem:[%s961 + $0x8] sm:$0xff]
          %964 = vmatprep.subr.bf16.mxu0 0
          %965 = vmatpush1.bf16.xpose.msra.mxu0 %v816
          %966 = vmatprep.subr.bf16.mxu0 0
          %967 = vmatpush1.bf16.xpose.msra.mxu0 0
          %968 = vmatprep.subr.bf16.mxu0 0
          %969 = vmatpush1.bf16.xpose.msra.mxu0 0
          %970 = vmatprep.subr.bf16.mxu0 0
          %971 = vmatpush1.bf16.xpose.msra.mxu0 0
          %972 = vmatprep.subr.bf16.mxu0 0
          %973 = vmatpush1.bf16.xpose.msra.mxu0 0
          %974 = vmatprep.subr.bf16.mxu0 0
          %975 = vmatpush1.bf16.xpose.msra.mxu0 0
          %976 = vmatprep.subr.bf16.mxu0 0
          %977 = vmatpush1.bf16.xpose.msra.mxu0 0
          %978 = vmatprep.subr.bf16.mxu0 0
          %979 = vmatpush1.bf16.xpose.msra.mxu0 0
          %980 = vmatprep.subr.bf16.mxu0 0
          %981 = vmatpush1.bf16.xpose.msra.mxu0 0
          %982 = vmatprep.subr.bf16.mxu0 0
          %983 = vmatpush1.bf16.xpose.msra.mxu0 0
          %984 = vmatprep.subr.bf16.mxu0 0
          %985 = vmatpush1.bf16.xpose.msra.mxu0 0
          %986 = vmatprep.subr.bf16.mxu0 0
          %987 = vmatpush1.bf16.xpose.msra.mxu0 0
          %988 = vmatprep.subr.bf16.mxu0 0
          %989 = vmatpush1.bf16.xpose.msra.mxu0 0
          %990 = vmatprep.subr.bf16.mxu0 0
          %991 = vmatpush1.bf16.xpose.msra.mxu0 0
          %992 = vmatprep.subr.bf16.mxu0 0
          %993 = vmatpush1.bf16.xpose.msra.mxu0 0
          %994 = vmatprep.subr.bf16.mxu0 0
          %995 = vmatpush1.bf16.xpose.msra.mxu0 0
          %996 = vmatprep.mubr.bf16.mxu0 0
          %997 = vmatmul.mubr.bf16.gmra.mrb[0].mxu0 %v659
          %v998 = vpop.f32.mrb[0].mxu0
          %v999 = vadd.f32 0.0, %v998
          %v1000 = vpop.f32.mrb[0].mxu0
          %v1001 = vpop.f32.mrb[0].mxu0
          %v1002 = vadd.f32 0.0, %v1001
          %v1003 = vpop.f32.mrb[0].mxu0
          %1004 = vdwg.mxu0
          %v1005 = vadd.f32 %v962, %v999
          %v1006 = vadd.f32 %v963, %v1002
          %1007 = vst.msk [vmem:[%s961] sm:$0xff] %vm862, %v1005
          %1008 = vst.msk [vmem:[%s961 + $0x8] sm:$0xff] %vm862, %v1006
          %p1009 = scmp.eq.s32.totalorder %s37, 1
          // Predicated region
          $region77: #{tpu_custom_call.1} parent=71 // pred_check
            %p1010 = pneg %p1009
          $region78: #{tpu_custom_call.1} parent=71 // pred_check_branch
            %1012 = sbr.rel (%p1010) target = $region80
          $region79: #{tpu_custom_call.1} parent=71 // pred_region
            %v1013 = vld [vmem:[%s9] sm:$0xff]
            %v1014 = vld [vmem:[%s9 + $0x8] sm:$0xff]
            %v1015 = vld [vmem:[%s9 + $0x10] sm:$0xff]
            %v1016 = vld [vmem:[%s9 + $0x18] sm:$0xff]
            %v1017 = vld [vmem:[%s9 + $0x20] sm:$0xff]
            %v1018 = vld [vmem:[%s9 + $0x28] sm:$0xff]
            %v1019 = vld [vmem:[%s9 + $0x30] sm:$0xff]
            %v1020 = vld [vmem:[%s9 + $0x38] sm:$0xff]
            %v1021 = vld [vmem:[%s7] sm:$0x1]
            %v1022 = vld [vmem:[#allocation2] sm:$0xff]
            %v1023 = vld [vmem:[#allocation2 + $0x8] sm:$0xff]
            %v1024 = vmul.f32 %v1022, 0.0625
            %v1025 = vmul.f32 %v1023, 0.0625
            %v1026 = vsel %vm862, %v1024, -inf
            %1027 = vmax.xlane.f32.xlu0 %v1026
            %v1028 = vpop.xlane.xlu0 %1027
            %v1029 = vsel %vm862, %v1025, -inf
            %1030 = vmax.xlane.f32.xlu0 %v1029
            %v1031 = vpop.xlane.xlu0 %1030
            %v1032 = vsub.f32 %v1024, %v1028
            %v1033 = vsub.f32 %v1025, %v1031
            %v1034 = vmul.f32 %v1032, 1.442695
            %v1035 = vpow.pop %v1034
            %v1036 = vmul.f32 %v1033, 1.442695
            %v1037 = vpow.pop %v1036
            %v1038 = vsel %vm862, %v1035, 0.0
            %1039 = vadd.xlane.f32.xlu0 %v1038
            %v1040 = vpop.xlane.xlu0 %1039
            %v1041 = vsel %vm862, %v1037, 0.0
            %1042 = vadd.xlane.f32.xlu0 %v1041
            %v1043 = vpop.xlane.xlu0 %1042
            %v1044 = vrcp.pop %v1040
            %v1045 = vrcp.pop %v1043
            %v1046 = vmul.f32 %v1035, %v1044
            %v1047 = vmul.f32 %v1037, %v1045
            %v1048 = vld [vmem:[%s8] sm:$0xf]
            %v1049 = vld [vmem:[%s8 + $0x4] sm:$0xf]
            %v1050 = vld [vmem:[%s8 + $0x8] sm:$0xf]
            %v1051 = vld [vmem:[%s8 + $0xc] sm:$0xf]
            %v1052 = vld [vmem:[%s8 + $0x10] sm:$0xf]
            %v1053 = vld [vmem:[%s8 + $0x14] sm:$0xf]
            %v1054 = vld [vmem:[%s8 + $0x18] sm:$0xf]
            %v1055 = vld [vmem:[%s8 + $0x1c] sm:$0xf]
            %v1056 = vpack.c.bf16 %v1047, %v1046
            %v1065 = vunpack.c.l.b16 %v1048
            %v1066 = vunpack.c.l.b16 %v1049
            %v1067 = vunpack.c.l.b16 %v1050
            %v1068 = vunpack.c.l.b16 %v1051
            %v1069 = vunpack.c.l.b16 %v1052
            %v1070 = vunpack.c.l.b16 %v1053
            %v1071 = vunpack.c.l.b16 %v1054
            %v1072 = vunpack.c.l.b16 %v1055
            %v1073 = vpack.c.b16 %v1066, %v1065
            %v1074 = vpack.c.b16 %v1068, %v1067
            %v1075 = vpack.c.b16 %v1070, %v1069
            %v1076 = vpack.c.b16 %v1072, %v1071
            %v1078 = vsel %vm862, %v1073, 0
            %v1081 = vsel %vm862, %v1074, 0
            %v1084 = vsel %vm862, %v1075, 0
            %v1087 = vsel %vm862, %v1076, 0
            %1089 = vmatprep.subr.bf16.mxu0 0
            %1090 = vmatpush1.bf16.msra.mxu0 %v1056
            %1091 = vmatprep.subr.bf16.mxu0 0
            %1092 = vmatpush1.bf16.msra.mxu0 0
            %1093 = vmatprep.subr.bf16.mxu0 0
            %1094 = vmatpush1.bf16.msra.mxu0 0
            %1095 = vmatprep.subr.bf16.mxu0 0
            %1096 = vmatpush1.bf16.msra.mxu0 0
            %1097 = vmatprep.subr.bf16.mxu0 0
            %1098 = vmatpush1.bf16.msra.mxu0 0
            %1099 = vmatprep.subr.bf16.mxu0 0
            %1100 = vmatpush1.bf16.msra.mxu0 0
            %1101 = vmatprep.subr.bf16.mxu0 0
            %1102 = vmatpush1.bf16.msra.mxu0 0
            %1103 = vmatprep.subr.bf16.mxu0 0
            %1104 = vmatpush1.bf16.msra.mxu0 0
            %1105 = vmatprep.subr.bf16.mxu0 0
            %1106 = vmatpush1.bf16.msra.mxu0 0
            %1107 = vmatprep.subr.bf16.mxu0 0
            %1108 = vmatpush1.bf16.msra.mxu0 0
            %1109 = vmatprep.subr.bf16.mxu0 0
            %1110 = vmatpush1.bf16.msra.mxu0 0
            %1111 = vmatprep.subr.bf16.mxu0 0
            %1112 = vmatpush1.bf16.msra.mxu0 0
            %1113 = vmatprep.subr.bf16.mxu0 0
            %1114 = vmatpush1.bf16.msra.mxu0 0
            %1115 = vmatprep.subr.bf16.mxu0 0
            %1116 = vmatpush1.bf16.msra.mxu0 0
            %1117 = vmatprep.subr.bf16.mxu0 0
            %1118 = vmatpush1.bf16.msra.mxu0 0
            %1119 = vmatprep.subr.bf16.mxu0 0
            %1120 = vmatpush1.bf16.msra.mxu0 0
            %1121 = vmatprep.mubr.bf16.mxu0 0
            %1122 = vmatmul.mubr.bf16.gmra.mrb[0].mxu0 %v1078
            %v1123 = vpop.f32.mrb[0].mxu0
            %v1124 = vadd.f32 0.0, %v1123
            %v1125 = vpop.f32.mrb[0].mxu0
            %v1126 = vpop.f32.mrb[0].mxu0
            %v1127 = vadd.f32 0.0, %v1126
            %v1128 = vpop.f32.mrb[0].mxu0
            %1129 = vmatprep.mubr.bf16.mxu0 0
            %1130 = vmatmul.mubr.bf16.gmra.mrb[0].mxu0 %v1081
            %v1131 = vpop.f32.mrb[0].mxu0
            %v1132 = vadd.f32 0.0, %v1131
            %v1133 = vpop.f32.mrb[0].mxu0
            %v1134 = vpop.f32.mrb[0].mxu0
            %v1135 = vadd.f32 0.0, %v1134
            %v1136 = vpop.f32.mrb[0].mxu0
            %1137 = vmatprep.mubr.bf16.mxu0 0
            %1138 = vmatmul.mubr.bf16.gmra.mrb[0].mxu0 %v1084
            %v1139 = vpop.f32.mrb[0].mxu0
            %v1140 = vadd.f32 0.0, %v1139
            %v1141 = vpop.f32.mrb[0].mxu0
            %v1142 = vpop.f32.mrb[0].mxu0
            %v1143 = vadd.f32 0.0, %v1142
            %v1144 = vpop.f32.mrb[0].mxu0
            %1145 = vmatprep.mubr.bf16.mxu0 0
            %1146 = vmatmul.mubr.bf16.gmra.mrb[0].mxu0 %v1087
            %v1147 = vpop.f32.mrb[0].mxu0
            %v1148 = vadd.f32 0.0, %v1147
            %v1149 = vpop.f32.mrb[0].mxu0
            %v1150 = vpop.f32.mrb[0].mxu0
            %v1151 = vadd.f32 0.0, %v1150
            %v1152 = vpop.f32.mrb[0].mxu0
            %1153 = vdwg.mxu0
            %v1154 = vpack.c.bf16 %v1127, %v1124
            %v1155 = vpack.c.bf16 %v1135, %v1132
            %v1156 = vpack.c.bf16 %v1143, %v1140
            %v1157 = vpack.c.bf16 %v1151, %v1148
            %v1158 = vld [vmem:[%s6] sm:$0xf]
            %v1159 = vld [vmem:[%s6 + $0x4] sm:$0xf]
            %v1161 = vlaneseq
            %v1162 = vshrl.u32 %v1161, 7
            %v1163 = vsub.s32 0, %v1162
            %v1164 = vrot.slane %v1021, %v1163
            %v1166 = vmul.f32 %v1124, %v1164
            %v1167 = vmul.f32 %v1127, %v1164
            %v1168 = vmul.f32 %v1132, %v1164
            %v1169 = vmul.f32 %v1135, %v1164
            %v1170 = vmul.f32 %v1140, %v1164
            %v1171 = vmul.f32 %v1143, %v1164
            %v1172 = vmul.f32 %v1148, %v1164
            %v1173 = vmul.f32 %v1151, %v1164
            %v1174 = vsel %vm862, %v1166, 0.0
            %1175 = vadd.xlane.f32.xlu0 %v1174
            %v1176 = vpop.xlane.xlu0 %1175
            %v1177 = vsel %vm862, %v1167, 0.0
            %1178 = vadd.xlane.f32.xlu0 %v1177
            %v1179 = vpop.xlane.xlu0 %1178
            %v1180 = vsel %vm862, %v1168, 0.0
            %1181 = vadd.xlane.f32.xlu0 %v1180
            %v1182 = vpop.xlane.xlu0 %1181
            %v1183 = vsel %vm862, %v1169, 0.0
            %1184 = vadd.xlane.f32.xlu0 %v1183
            %v1185 = vpop.xlane.xlu0 %1184
            %v1186 = vsel %vm862, %v1170, 0.0
            %1187 = vadd.xlane.f32.xlu0 %v1186
            %v1188 = vpop.xlane.xlu0 %1187
            %v1189 = vsel %vm862, %v1171, 0.0
            %1190 = vadd.xlane.f32.xlu0 %v1189
            %v1191 = vpop.xlane.xlu0 %1190
            %v1192 = vsel %vm862, %v1172, 0.0
            %1193 = vadd.xlane.f32.xlu0 %v1192
            %v1194 = vpop.xlane.xlu0 %1193
            %v1195 = vsel %vm862, %v1173, 0.0
            %1196 = vadd.xlane.f32.xlu0 %v1195
            %v1197 = vpop.xlane.xlu0 %1196
            %v1198 = vadd.f32 %v1013, %v1176
            %v1199 = vadd.f32 %v1014, %v1179
            %v1200 = vadd.f32 %v1015, %v1182
            %v1201 = vadd.f32 %v1016, %v1185
            %v1202 = vadd.f32 %v1017, %v1188
            %v1203 = vadd.f32 %v1018, %v1191
            %v1204 = vadd.f32 %v1019, %v1194
            %v1205 = vadd.f32 %v1020, %v1197
            %v1206 = vld [vmem:[%s865] sm:$0xff]
            %v1207 = vld [vmem:[%s865 + $0x8] sm:$0xff]
            %v1208 = vmul.f32 %v1206, 0.0625
            %v1209 = vmul.f32 %v1207, 0.0625
            %v1210 = vsel %vm862, %v1208, -inf
            %1211 = vmax.xlane.f32.xlu0 %v1210
            %v1212 = vpop.xlane.xlu0 %1211
            %v1213 = vsel %vm862, %v1209, -inf
            %1214 = vmax.xlane.f32.xlu0 %v1213
            %v1215 = vpop.xlane.xlu0 %1214
            %v1216 = vsub.f32 %v1208, %v1212
            %v1217 = vsub.f32 %v1209, %v1215
            %v1218 = vmul.f32 %v1216, 1.442695
            %v1219 = vpow.pop %v1218
            %v1220 = vmul.f32 %v1217, 1.442695
            %v1221 = vpow.pop %v1220
            %v1222 = vsel %vm862, %v1219, 0.0
            %1223 = vadd.xlane.f32.xlu0 %v1222
            %v1224 = vpop.xlane.xlu0 %1223
            %v1225 = vsel %vm862, %v1221, 0.0
            %1226 = vadd.xlane.f32.xlu0 %v1225
            %v1227 = vpop.xlane.xlu0 %1226
            %v1228 = vrcp.pop %v1224
            %v1229 = vrcp.pop %v1227
            %v1230 = vmul.f32 %v1219, %v1228
            %v1231 = vmul.f32 %v1221, %v1229
            %v1232 = vpack.c.bf16 %v1231, %v1230
            %1233 = vrot.lane.b32.xlu0 %v1073, 112
            %v1234 = vpop.permute.xlu0 %1233
            %1235 = vrot.lane.b32.xlu0 %v1074, 112
            %v1236 = vpop.permute.xlu0 %1235
            %1237 = vrot.lane.b32.xlu0 %v1075, 112
            %v1238 = vpop.permute.xlu0 %1237
            %1239 = vrot.lane.b32.xlu0 %v1076, 112
            %v1240 = vpop.permute.xlu0 %1239
            %v1242 = vsel %vm862, %v1234, 0
            %v1245 = vsel %vm862, %v1236, 0
            %v1248 = vsel %vm862, %v1238, 0
            %v1251 = vsel %vm862, %v1240, 0
            %1253 = vmatprep.subr.bf16.mxu0 0
            %1254 = vmatpush1.bf16.msra.mxu0 %v1232
            %1255 = vmatprep.subr.bf16.mxu0 0
            %1256 = vmatpush1.bf16.msra.mxu0 0
            %1257 = vmatprep.subr.bf16.mxu0 0
            %1258 = vmatpush1.bf16.msra.mxu0 0
            %1259 = vmatprep.subr.bf16.mxu0 0
            %1260 = vmatpush1.bf16.msra.mxu0 0
            %1261 = vmatprep.subr.bf16.mxu0 0
            %1262 = vmatpush1.bf16.msra.mxu0 0
            %1263 = vmatprep.subr.bf16.mxu0 0
            %1264 = vmatpush1.bf16.msra.mxu0 0
            %1265 = vmatprep.subr.bf16.mxu0 0
            %1266 = vmatpush1.bf16.msra.mxu0 0
            %1267 = vmatprep.subr.bf16.mxu0 0
            %1268 = vmatpush1.bf16.msra.mxu0 0
            %1269 = vmatprep.subr.bf16.mxu0 0
            %1270 = vmatpush1.bf16.msra.mxu0 0
            %1271 = vmatprep.subr.bf16.mxu0 0
            %1272 = vmatpush1.bf16.msra.mxu0 0
            %1273 = vmatprep.subr.bf16.mxu0 0
            %1274 = vmatpush1.bf16.msra.mxu0 0
            %1275 = vmatprep.subr.bf16.mxu0 0
            %1276 = vmatpush1.bf16.msra.mxu0 0
            %1277 = vmatprep.subr.bf16.mxu0 0
            %1278 = vmatpush1.bf16.msra.mxu0 0
            %1279 = vmatprep.subr.bf16.mxu0 0
            %1280 = vmatpush1.bf16.msra.mxu0 0
            %1281 = vmatprep.subr.bf16.mxu0 0
            %1282 = vmatpush1.bf16.msra.mxu0 0
            %1283 = vmatprep.subr.bf16.mxu0 0
            %1284 = vmatpush1.bf16.msra.mxu0 0
            %1285 = vmatprep.mubr.bf16.mxu0 0
            %1286 = vmatmul.mubr.bf16.gmra.mrb[0].mxu0 %v1242
            %v1287 = vpop.f32.mrb[0].mxu0
            %v1288 = vadd.f32 0.0, %v1287
            %v1289 = vpop.f32.mrb[0].mxu0
            %v1290 = vpop.f32.mrb[0].mxu0
            %v1291 = vadd.f32 0.0, %v1290
            %v1292 = vpop.f32.mrb[0].mxu0
            %1293 = vmatprep.mubr.bf16.mxu0 0
            %1294 = vmatmul.mubr.bf16.gmra.mrb[0].mxu0 %v1245
            %v1295 = vpop.f32.mrb[0].mxu0
            %v1296 = vadd.f32 0.0, %v1295
            %v1297 = vpop.f32.mrb[0].mxu0
            %v1298 = vpop.f32.mrb[0].mxu0
            %v1299 = vadd.f32 0.0, %v1298
            %v1300 = vpop.f32.mrb[0].mxu0
            %1301 = vmatprep.mubr.bf16.mxu0 0
            %1302 = vmatmul.mubr.bf16.gmra.mrb[0].mxu0 %v1248
            %v1303 = vpop.f32.mrb[0].mxu0
            %v1304 = vadd.f32 0.0, %v1303
            %v1305 = vpop.f32.mrb[0].mxu0
            %v1306 = vpop.f32.mrb[0].mxu0
            %v1307 = vadd.f32 0.0, %v1306
            %v1308 = vpop.f32.mrb[0].mxu0
            %1309 = vmatprep.mubr.bf16.mxu0 0
            %1310 = vmatmul.mubr.bf16.gmra.mrb[0].mxu0 %v1251
            %v1311 = vpop.f32.mrb[0].mxu0
            %v1312 = vadd.f32 0.0, %v1311
            %v1313 = vpop.f32.mrb[0].mxu0
            %v1314 = vpop.f32.mrb[0].mxu0
            %v1315 = vadd.f32 0.0, %v1314
            %v1316 = vpop.f32.mrb[0].mxu0
            %1317 = vdwg.mxu0
            %v1318 = vpack.c.bf16 %v1291, %v1288
            %v1319 = vpack.c.bf16 %v1299, %v1296
            %v1320 = vpack.c.bf16 %v1307, %v1304
            %v1321 = vpack.c.bf16 %v1315, %v1312
            %v1322 = vld [vmem:[%s6 + $0x8] sm:$0xf]
            %v1323 = vld [vmem:[%s6 + $0xc] sm:$0xf]
            %v1326 = vunpack.c.l.b16 %v1322
            %v1327 = vunpack.c.l.b16 %v1323
            %v1328 = vpack.c.b16 %v1327, %v1326
            %v1331 = vsel %vm862, %v1318, 0
            %v1334 = vsel %vm862, %v1319, 0
            %v1337 = vsel %vm862, %v1320, 0
            %v1340 = vsel %vm862, %v1321, 0
            %1342 = vmatprep.subr.bf16.mxu0 0
            %1343 = vmatpush1.bf16.msra.mxu0 %v1328
            %1344 = vmatprep.subr.bf16.mxu0 0
            %1345 = vmatpush1.bf16.msra.mxu0 0
            %1346 = vmatprep.subr.bf16.mxu0 0
            %1347 = vmatpush1.bf16.msra.mxu0 0
            %1348 = vmatprep.subr.bf16.mxu0 0
            %1349 = vmatpush1.bf16.msra.mxu0 0
            %1350 = vmatprep.subr.bf16.mxu0 0
            %1351 = vmatpush1.bf16.msra.mxu0 0
            %1352 = vmatprep.subr.bf16.mxu0 0
            %1353 = vmatpush1.bf16.msra.mxu0 0
            %1354 = vmatprep.subr.bf16.mxu0 0
            %1355 = vmatpush1.bf16.msra.mxu0 0
            %1356 = vmatprep.subr.bf16.mxu0 0
            %1357 = vmatpush1.bf16.msra.mxu0 0
            %1358 = vmatprep.subr.bf16.mxu0 0
            %1359 = vmatpush1.bf16.msra.mxu0 0
            %1360 = vmatprep.subr.bf16.mxu0 0
            %1361 = vmatpush1.bf16.msra.mxu0 0
            %1362 = vmatprep.subr.bf16.mxu0 0
            %1363 = vmatpush1.bf16.msra.mxu0 0
            %1364 = vmatprep.subr.bf16.mxu0 0
            %1365 = vmatpush1.bf16.msra.mxu0 0
            %1366 = vmatprep.subr.bf16.mxu0 0
            %1367 = vmatpush1.bf16.msra.mxu0 0
            %1368 = vmatprep.subr.bf16.mxu0 0
            %1369 = vmatpush1.bf16.msra.mxu0 0
            %1370 = vmatprep.subr.bf16.mxu0 0
            %1371 = vmatpush1.bf16.msra.mxu0 0
            %1372 = vmatprep.subr.bf16.mxu0 0
            %1373 = vmatpush1.bf16.msra.mxu0 0
            %1374 = vmatprep.mubr.bf16.mxu0 0
            %1375 = vmatmul.mubr.bf16.gmra.mrb[0].mxu0 %v1331
            %v1376 = vpop.f32.mrb[0].mxu0
            %v1377 = vadd.f32 0.0, %v1376
            %v1378 = vpop.f32.mrb[0].mxu0
            %v1379 = vpop.f32.mrb[0].mxu0
            %v1380 = vadd.f32 0.0, %v1379
            %v1381 = vpop.f32.mrb[0].mxu0
            %1382 = vmatprep.mubr.bf16.mxu0 0
            %1383 = vmatmul.mubr.bf16.gmra.mrb[0].mxu0 %v1334
            %v1384 = vpop.f32.mrb[0].mxu0
            %v1385 = vadd.f32 0.0, %v1384
            %v1386 = vpop.f32.mrb[0].mxu0
            %v1387 = vpop.f32.mrb[0].mxu0
            %v1388 = vadd.f32 0.0, %v1387
            %v1389 = vpop.f32.mrb[0].mxu0
            %1390 = vmatprep.mubr.bf16.mxu0 0
            %1391 = vmatmul.mubr.bf16.gmra.mrb[0].mxu0 %v1337
            %v1392 = vpop.f32.mrb[0].mxu0
            %v1393 = vadd.f32 0.0, %v1392
            %v1394 = vpop.f32.mrb[0].mxu0
            %v1395 = vpop.f32.mrb[0].mxu0
            %v1396 = vadd.f32 0.0, %v1395
            %v1397 = vpop.f32.mrb[0].mxu0
            %1398 = vmatprep.mubr.bf16.mxu0 0
            %1399 = vmatmul.mubr.bf16.gmra.mrb[0].mxu0 %v1340
            %v1400 = vpop.f32.mrb[0].mxu0
            %v1401 = vadd.f32 0.0, %v1400
            %v1402 = vpop.f32.mrb[0].mxu0
            %v1403 = vpop.f32.mrb[0].mxu0
            %v1404 = vadd.f32 0.0, %v1403
            %v1405 = vpop.f32.mrb[0].mxu0
            %1406 = vdwg.mxu0
            %v1409 = vunpack.c.l.b16 %v1158
            %v1410 = vunpack.c.l.b16 %v1159
            %v1411 = vpack.c.b16 %v1410, %v1409
            %v1414 = vsel %vm862, %v1154, 0
            %v1417 = vsel %vm862, %v1155, 0
            %v1420 = vsel %vm862, %v1156, 0
            %v1423 = vsel %vm862, %v1157, 0
            %1425 = vmatprep.subr.bf16.mxu0 0
            %1426 = vmatpush1.bf16.msra.mxu0 %v1411
            %1427 = vmatprep.subr.bf16.mxu0 0
            %1428 = vmatpush1.bf16.msra.mxu0 0
            %1429 = vmatprep.subr.bf16.mxu0 0
            %1430 = vmatpush1.bf16.msra.mxu0 0
            %1431 = vmatprep.subr.bf16.mxu0 0
            %1432 = vmatpush1.bf16.msra.mxu0 0
            %1433 = vmatprep.subr.bf16.mxu0 0
            %1434 = vmatpush1.bf16.msra.mxu0 0
            %1435 = vmatprep.subr.bf16.mxu0 0
            %1436 = vmatpush1.bf16.msra.mxu0 0
            %1437 = vmatprep.subr.bf16.mxu0 0
            %1438 = vmatpush1.bf16.msra.mxu0 0
            %1439 = vmatprep.subr.bf16.mxu0 0
            %1440 = vmatpush1.bf16.msra.mxu0 0
            %1441 = vmatprep.subr.bf16.mxu0 0
            %1442 = vmatpush1.bf16.msra.mxu0 0
            %1443 = vmatprep.subr.bf16.mxu0 0
            %1444 = vmatpush1.bf16.msra.mxu0 0
            %1445 = vmatprep.subr.bf16.mxu0 0
            %1446 = vmatpush1.bf16.msra.mxu0 0
            %1447 = vmatprep.subr.bf16.mxu0 0
            %1448 = vmatpush1.bf16.msra.mxu0 0
            %1449 = vmatprep.subr.bf16.mxu0 0
            %1450 = vmatpush1.bf16.msra.mxu0 0
            %1451 = vmatprep.subr.bf16.mxu0 0
            %1452 = vmatpush1.bf16.msra.mxu0 0
            %1453 = vmatprep.subr.bf16.mxu0 0
            %1454 = vmatpush1.bf16.msra.mxu0 0
            %1455 = vmatprep.subr.bf16.mxu0 0
            %1456 = vmatpush1.bf16.msra.mxu0 0
            %1457 = vmatprep.mubr.bf16.mxu0 0
            %1458 = vmatmul.mubr.bf16.gmra.mrb[0].mxu0 %v1414
            %v1459 = vpop.f32.mrb[0].mxu0
            %v1460 = vadd.f32 %v1377, %v1459
            %v1461 = vpop.f32.mrb[0].mxu0
            %v1462 = vpop.f32.mrb[0].mxu0
            %v1463 = vadd.f32 %v1380, %v1462
            %v1464 = vpop.f32.mrb[0].mxu0
            %1465 = vmatprep.mubr.bf16.mxu0 0
            %1466 = vmatmul.mubr.bf16.gmra.mrb[0].mxu0 %v1417
            %v1467 = vpop.f32.mrb[0].mxu0
            %v1468 = vadd.f32 %v1385, %v1467
            %v1469 = vpop.f32.mrb[0].mxu0
            %v1470 = vpop.f32.mrb[0].mxu0
            %v1471 = vadd.f32 %v1388, %v1470
            %v1472 = vpop.f32.mrb[0].mxu0
            %1473 = vmatprep.mubr.bf16.mxu0 0
            %1474 = vmatmul.mubr.bf16.gmra.mrb[0].mxu0 %v1420
            %v1475 = vpop.f32.mrb[0].mxu0
            %v1476 = vadd.f32 %v1393, %v1475
            %v1477 = vpop.f32.mrb[0].mxu0
            %v1478 = vpop.f32.mrb[0].mxu0
            %v1479 = vadd.f32 %v1396, %v1478
            %v1480 = vpop.f32.mrb[0].mxu0
            %1481 = vmatprep.mubr.bf16.mxu0 0
            %1482 = vmatmul.mubr.bf16.gmra.mrb[0].mxu0 %v1423
            %v1483 = vpop.f32.mrb[0].mxu0
            %v1484 = vadd.f32 %v1401, %v1483
            %v1485 = vpop.f32.mrb[0].mxu0
            %v1486 = vpop.f32.mrb[0].mxu0
            %v1487 = vadd.f32 %v1404, %v1486
            %v1488 = vpop.f32.mrb[0].mxu0
            %1489 = vdwg.mxu0
            %1490 = vrot.lane.b32.xlu0 %v1164, 112
            %v1491 = vpop.permute.xlu0 %1490
            %v1493 = vmul.f32 %v1288, %v1491
            %v1494 = vmul.f32 %v1291, %v1491
            %v1495 = vmul.f32 %v1296, %v1491
            %v1496 = vmul.f32 %v1299, %v1491
            %v1497 = vmul.f32 %v1304, %v1491
            %v1498 = vmul.f32 %v1307, %v1491
            %v1499 = vmul.f32 %v1312, %v1491
            %v1500 = vmul.f32 %v1315, %v1491
            %v1501 = vsel %vm862, %v1493, 0.0
            %1502 = vadd.xlane.f32.xlu0 %v1501
            %v1503 = vpop.xlane.xlu0 %1502
            %v1504 = vsel %vm862, %v1494, 0.0
            %1505 = vadd.xlane.f32.xlu0 %v1504
            %v1506 = vpop.xlane.xlu0 %1505
            %v1507 = vsel %vm862, %v1495, 0.0
            %1508 = vadd.xlane.f32.xlu0 %v1507
            %v1509 = vpop.xlane.xlu0 %1508
            %v1510 = vsel %vm862, %v1496, 0.0
            %1511 = vadd.xlane.f32.xlu0 %v1510
            %v1512 = vpop.xlane.xlu0 %1511
            %v1513 = vsel %vm862, %v1497, 0.0
            %1514 = vadd.xlane.f32.xlu0 %v1513
            %v1515 = vpop.xlane.xlu0 %1514
            %v1516 = vsel %vm862, %v1498, 0.0
            %1517 = vadd.xlane.f32.xlu0 %v1516
            %v1518 = vpop.xlane.xlu0 %1517
            %v1519 = vsel %vm862, %v1499, 0.0
            %1520 = vadd.xlane.f32.xlu0 %v1519
            %v1521 = vpop.xlane.xlu0 %1520
            %v1522 = vsel %vm862, %v1500, 0.0
            %1523 = vadd.xlane.f32.xlu0 %v1522
            %v1524 = vpop.xlane.xlu0 %1523
            %v1525 = vadd.f32 %v1198, %v1503
            %v1526 = vadd.f32 %v1199, %v1506
            %v1527 = vadd.f32 %v1200, %v1509
            %v1528 = vadd.f32 %v1201, %v1512
            %v1529 = vadd.f32 %v1202, %v1515
            %v1530 = vadd.f32 %v1203, %v1518
            %v1531 = vadd.f32 %v1204, %v1521
            %v1532 = vadd.f32 %v1205, %v1524
            %v1533 = vld [vmem:[%s913] sm:$0xff]
            %v1534 = vld [vmem:[%s913 + $0x8] sm:$0xff]
            %v1535 = vmul.f32 %v1533, 0.0625
            %v1536 = vmul.f32 %v1534, 0.0625
            %v1537 = vsel %vm862, %v1535, -inf
            %1538 = vmax.xlane.f32.xlu0 %v1537
            %v1539 = vpop.xlane.xlu0 %1538
            %v1540 = vsel %vm862, %v1536, -inf
            %1541 = vmax.xlane.f32.xlu0 %v1540
            %v1542 = vpop.xlane.xlu0 %1541
            %v1543 = vsub.f32 %v1535, %v1539
            %v1544 = vsub.f32 %v1536, %v1542
            %v1545 = vmul.f32 %v1543, 1.442695
            %v1546 = vpow.pop %v1545
            %v1547 = vmul.f32 %v1544, 1.442695
            %v1548 = vpow.pop %v1547
            %v1549 = vsel %vm862, %v1546, 0.0
            %1550 = vadd.xlane.f32.xlu0 %v1549
            %v1551 = vpop.xlane.xlu0 %1550
            %v1552 = vsel %vm862, %v1548, 0.0
            %1553 = vadd.xlane.f32.xlu0 %v1552
            %v1554 = vpop.xlane.xlu0 %1553
            %v1555 = vrcp.pop %v1551
            %v1556 = vrcp.pop %v1554
            %v1557 = vmul.f32 %v1546, %v1555
            %v1558 = vmul.f32 %v1548, %v1556
            %v1559 = vpack.c.bf16 %v1558, %v1557
            %1560 = vrot.lane.b32.xlu0 %v1073, 96
            %v1561 = vpop.permute.xlu0 %1560
            %1562 = vrot.lane.b32.xlu0 %v1074, 96
            %v1563 = vpop.permute.xlu0 %1562
            %1564 = vrot.lane.b32.xlu0 %v1075, 96
            %v1565 = vpop.permute.xlu0 %1564
            %1566 = vrot.lane.b32.xlu0 %v1076, 96
            %v1567 = vpop.permute.xlu0 %1566
            %v1569 = vsel %vm862, %v1561, 0
            %v1572 = vsel %vm862, %v1563, 0
            %v1575 = vsel %vm862, %v1565, 0
            %v1578 = vsel %vm862, %v1567, 0
            %1580 = vmatprep.subr.bf16.mxu0 0
            %1581 = vmatpush1.bf16.msra.mxu0 %v1559
            %1582 = vmatprep.subr.bf16.mxu0 0
            %1583 = vmatpush1.bf16.msra.mxu0 0
            %1584 = vmatprep.subr.bf16.mxu0 0
            %1585 = vmatpush1.bf16.msra.mxu0 0
            %1586 = vmatprep.subr.bf16.mxu0 0
            %1587 = vmatpush1.bf16.msra.mxu0 0
            %1588 = vmatprep.subr.bf16.mxu0 0
            %1589 = vmatpush1.bf16.msra.mxu0 0
            %1590 = vmatprep.subr.bf16.mxu0 0
            %1591 = vmatpush1.bf16.msra.mxu0 0
            %1592 = vmatprep.subr.bf16.mxu0 0
            %1593 = vmatpush1.bf16.msra.mxu0 0
            %1594 = vmatprep.subr.bf16.mxu0 0
            %1595 = vmatpush1.bf16.msra.mxu0 0
            %1596 = vmatprep.subr.bf16.mxu0 0
            %1597 = vmatpush1.bf16.msra.mxu0 0
            %1598 = vmatprep.subr.bf16.mxu0 0
            %1599 = vmatpush1.bf16.msra.mxu0 0
            %1600 = vmatprep.subr.bf16.mxu0 0
            %1601 = vmatpush1.bf16.msra.mxu0 0
            %1602 = vmatprep.subr.bf16.mxu0 0
            %1603 = vmatpush1.bf16.msra.mxu0 0
            %1604 = vmatprep.subr.bf16.mxu0 0
            %1605 = vmatpush1.bf16.msra.mxu0 0
            %1606 = vmatprep.subr.bf16.mxu0 0
            %1607 = vmatpush1.bf16.msra.mxu0 0
            %1608 = vmatprep.subr.bf16.mxu0 0
            %1609 = vmatpush1.bf16.msra.mxu0 0
            %1610 = vmatprep.subr.bf16.mxu0 0
            %1611 = vmatpush1.bf16.msra.mxu0 0
            %1612 = vmatprep.mubr.bf16.mxu0 0
            %1613 = vmatmul.mubr.bf16.gmra.mrb[0].mxu0 %v1569
            %v1614 = vpop.f32.mrb[0].mxu0
            %v1615 = vadd.f32 0.0, %v1614
            %v1616 = vpop.f32.mrb[0].mxu0
            %v1617 = vpop.f32.mrb[0].mxu0
            %v1618 = vadd.f32 0.0, %v1617
            %v1619 = vpop.f32.mrb[0].mxu0
            %1620 = vmatprep.mubr.bf16.mxu0 0
            %1621 = vmatmul.mubr.bf16.gmra.mrb[0].mxu0 %v1572
            %v1622 = vpop.f32.mrb[0].mxu0
            %v1623 = vadd.f32 0.0, %v1622
            %v1624 = vpop.f32.mrb[0].mxu0
            %v1625 = vpop.f32.mrb[0].mxu0
            %v1626 = vadd.f32 0.0, %v1625
            %v1627 = vpop.f32.mrb[0].mxu0
            %1628 = vmatprep.mubr.bf16.mxu0 0
            %1629 = vmatmul.mubr.bf16.gmra.mrb[0].mxu0 %v1575
            %v1630 = vpop.f32.mrb[0].mxu0
            %v1631 = vadd.f32 0.0, %v1630
            %v1632 = vpop.f32.mrb[0].mxu0
            %v1633 = vpop.f32.mrb[0].mxu0
            %v1634 = vadd.f32 0.0, %v1633
            %v1635 = vpop.f32.mrb[0].mxu0
            %1636 = vmatprep.mubr.bf16.mxu0 0
            %1637 = vmatmul.mubr.bf16.gmra.mrb[0].mxu0 %v1578
            %v1638 = vpop.f32.mrb[0].mxu0
            %v1639 = vadd.f32 0.0, %v1638
            %v1640 = vpop.f32.mrb[0].mxu0
            %v1641 = vpop.f32.mrb[0].mxu0
            %v1642 = vadd.f32 0.0, %v1641
            %v1643 = vpop.f32.mrb[0].mxu0
            %1644 = vdwg.mxu0
            %v1645 = vpack.c.bf16 %v1618, %v1615
            %v1646 = vpack.c.bf16 %v1626, %v1623
            %v1647 = vpack.c.bf16 %v1634, %v1631
            %v1648 = vpack.c.bf16 %v1642, %v1639
            %v1649 = vld [vmem:[%s6 + $0x10] sm:$0xf]
            %v1650 = vld [vmem:[%s6 + $0x14] sm:$0xf]
            %v1653 = vunpack.c.l.b16 %v1649
            %v1654 = vunpack.c.l.b16 %v1650
            %v1655 = vpack.c.b16 %v1654, %v1653
            %v1658 = vsel %vm862, %v1645, 0
            %v1661 = vsel %vm862, %v1646, 0
            %v1664 = vsel %vm862, %v1647, 0
            %v1667 = vsel %vm862, %v1648, 0
            %1669 = vmatprep.subr.bf16.mxu0 0
            %1670 = vmatpush1.bf16.msra.mxu0 %v1655
            %1671 = vmatprep.subr.bf16.mxu0 0
            %1672 = vmatpush1.bf16.msra.mxu0 0
            %1673 = vmatprep.subr.bf16.mxu0 0
            %1674 = vmatpush1.bf16.msra.mxu0 0
            %1675 = vmatprep.subr.bf16.mxu0 0
            %1676 = vmatpush1.bf16.msra.mxu0 0
            %1677 = vmatprep.subr.bf16.mxu0 0
            %1678 = vmatpush1.bf16.msra.mxu0 0
            %1679 = vmatprep.subr.bf16.mxu0 0
            %1680 = vmatpush1.bf16.msra.mxu0 0
            %1681 = vmatprep.subr.bf16.mxu0 0
            %1682 = vmatpush1.bf16.msra.mxu0 0
            %1683 = vmatprep.subr.bf16.mxu0 0
            %1684 = vmatpush1.bf16.msra.mxu0 0
            %1685 = vmatprep.subr.bf16.mxu0 0
            %1686 = vmatpush1.bf16.msra.mxu0 0
            %1687 = vmatprep.subr.bf16.mxu0 0
            %1688 = vmatpush1.bf16.msra.mxu0 0
            %1689 = vmatprep.subr.bf16.mxu0 0
            %1690 = vmatpush1.bf16.msra.mxu0 0
            %1691 = vmatprep.subr.bf16.mxu0 0
            %1692 = vmatpush1.bf16.msra.mxu0 0
            %1693 = vmatprep.subr.bf16.mxu0 0
            %1694 = vmatpush1.bf16.msra.mxu0 0
            %1695 = vmatprep.subr.bf16.mxu0 0
            %1696 = vmatpush1.bf16.msra.mxu0 0
            %1697 = vmatprep.subr.bf16.mxu0 0
            %1698 = vmatpush1.bf16.msra.mxu0 0
            %1699 = vmatprep.subr.bf16.mxu0 0
            %1700 = vmatpush1.bf16.msra.mxu0 0
            %1701 = vmatprep.mubr.bf16.mxu0 0
            %1702 = vmatmul.mubr.bf16.gmra.mrb[0].mxu0 %v1658
            %v1703 = vpop.f32.mrb[0].mxu0
            %v1704 = vadd.f32 0.0, %v1703
            %v1705 = vpop.f32.mrb[0].mxu0
            %v1706 = vpop.f32.mrb[0].mxu0
            %v1707 = vadd.f32 0.0, %v1706
            %v1708 = vpop.f32.mrb[0].mxu0
            %1709 = vmatprep.mubr.bf16.mxu0 0
            %1710 = vmatmul.mubr.bf16.gmra.mrb[0].mxu0 %v1661
            %v1711 = vpop.f32.mrb[0].mxu0
            %v1712 = vadd.f32 0.0, %v1711
            %v1713 = vpop.f32.mrb[0].mxu0
            %v1714 = vpop.f32.mrb[0].mxu0
            %v1715 = vadd.f32 0.0, %v1714
            %v1716 = vpop.f32.mrb[0].mxu0
            %1717 = vmatprep.mubr.bf16.mxu0 0
            %1718 = vmatmul.mubr.bf16.gmra.mrb[0].mxu0 %v1664
            %v1719 = vpop.f32.mrb[0].mxu0
            %v1720 = vadd.f32 0.0, %v1719
            %v1721 = vpop.f32.mrb[0].mxu0
            %v1722 = vpop.f32.mrb[0].mxu0
            %v1723 = vadd.f32 0.0, %v1722
            %v1724 = vpop.f32.mrb[0].mxu0
            %1725 = vmatprep.mubr.bf16.mxu0 0
            %1726 = vmatmul.mubr.bf16.gmra.mrb[0].mxu0 %v1667
            %v1727 = vpop.f32.mrb[0].mxu0
            %v1728 = vadd.f32 0.0, %v1727
            %v1729 = vpop.f32.mrb[0].mxu0
            %v1730 = vpop.f32.mrb[0].mxu0
            %v1731 = vadd.f32 0.0, %v1730
            %v1732 = vpop.f32.mrb[0].mxu0
            %1733 = vdwg.mxu0
            %v1734 = vadd.f32 %v1460, %v1704
            %v1735 = vadd.f32 %v1463, %v1707
            %v1736 = vadd.f32 %v1468, %v1712
            %v1737 = vadd.f32 %v1471, %v1715
            %v1738 = vadd.f32 %v1476, %v1720
            %v1739 = vadd.f32 %v1479, %v1723
            %v1740 = vadd.f32 %v1484, %v1728
            %v1741 = vadd.f32 %v1487, %v1731
            %1742 = vrot.lane.b32.xlu0 %v1164, 96
            %v1743 = vpop.permute.xlu0 %1742
            %v1745 = vmul.f32 %v1615, %v1743
            %v1746 = vmul.f32 %v1618, %v1743
            %v1747 = vmul.f32 %v1623, %v1743
            %v1748 = vmul.f32 %v1626, %v1743
            %v1749 = vmul.f32 %v1631, %v1743
            %v1750 = vmul.f32 %v1634, %v1743
            %v1751 = vmul.f32 %v1639, %v1743
            %v1752 = vmul.f32 %v1642, %v1743
            %v1753 = vsel %vm862, %v1745, 0.0
            %1754 = vadd.xlane.f32.xlu0 %v1753
            %v1755 = vpop.xlane.xlu0 %1754
            %v1756 = vsel %vm862, %v1746, 0.0
            %1757 = vadd.xlane.f32.xlu0 %v1756
            %v1758 = vpop.xlane.xlu0 %1757
            %v1759 = vsel %vm862, %v1747, 0.0
            %1760 = vadd.xlane.f32.xlu0 %v1759
            %v1761 = vpop.xlane.xlu0 %1760
            %v1762 = vsel %vm862, %v1748, 0.0
            %1763 = vadd.xlane.f32.xlu0 %v1762
            %v1764 = vpop.xlane.xlu0 %1763
            %v1765 = vsel %vm862, %v1749, 0.0
            %1766 = vadd.xlane.f32.xlu0 %v1765
            %v1767 = vpop.xlane.xlu0 %1766
            %v1768 = vsel %vm862, %v1750, 0.0
            %1769 = vadd.xlane.f32.xlu0 %v1768
            %v1770 = vpop.xlane.xlu0 %1769
            %v1771 = vsel %vm862, %v1751, 0.0
            %1772 = vadd.xlane.f32.xlu0 %v1771
            %v1773 = vpop.xlane.xlu0 %1772
            %v1774 = vsel %vm862, %v1752, 0.0
            %1775 = vadd.xlane.f32.xlu0 %v1774
            %v1776 = vpop.xlane.xlu0 %1775
            %v1777 = vadd.f32 %v1525, %v1755
            %v1778 = vadd.f32 %v1526, %v1758
            %v1779 = vadd.f32 %v1527, %v1761
            %v1780 = vadd.f32 %v1528, %v1764
            %v1781 = vadd.f32 %v1529, %v1767
            %v1782 = vadd.f32 %v1530, %v1770
            %v1783 = vadd.f32 %v1531, %v1773
            %v1784 = vadd.f32 %v1532, %v1776
            %v1785 = vld [vmem:[%s961] sm:$0xff]
            %v1786 = vld [vmem:[%s961 + $0x8] sm:$0xff]
            %v1787 = vmul.f32 %v1785, 0.0625
            %v1788 = vmul.f32 %v1786, 0.0625
            %v1789 = vsel %vm862, %v1787, -inf
            %1790 = vmax.xlane.f32.xlu0 %v1789
            %v1791 = vpop.xlane.xlu0 %1790
            %v1792 = vsel %vm862, %v1788, -inf
            %1793 = vmax.xlane.f32.xlu0 %v1792
            %v1794 = vpop.xlane.xlu0 %1793
            %v1795 = vsub.f32 %v1787, %v1791
            %v1796 = vsub.f32 %v1788, %v1794
            %v1797 = vmul.f32 %v1795, 1.442695
            %v1798 = vpow.pop %v1797
            %v1799 = vmul.f32 %v1796, 1.442695
            %v1800 = vpow.pop %v1799
            %v1801 = vsel %vm862, %v1798, 0.0
            %1802 = vadd.xlane.f32.xlu0 %v1801
            %v1803 = vpop.xlane.xlu0 %1802
            %v1804 = vsel %vm862, %v1800, 0.0
            %1805 = vadd.xlane.f32.xlu0 %v1804
            %v1806 = vpop.xlane.xlu0 %1805
            %v1807 = vrcp.pop %v1803
            %v1808 = vrcp.pop %v1806
            %v1809 = vmul.f32 %v1798, %v1807
            %v1810 = vmul.f32 %v1800, %v1808
            %v1811 = vpack.c.bf16 %v1810, %v1809
            %1812 = vrot.lane.b32.xlu0 %v1073, 80
            %v1813 = vpop.permute.xlu0 %1812
            %1814 = vrot.lane.b32.xlu0 %v1074, 80
            %v1815 = vpop.permute.xlu0 %1814
            %1816 = vrot.lane.b32.xlu0 %v1075, 80
            %v1817 = vpop.permute.xlu0 %1816
            %1818 = vrot.lane.b32.xlu0 %v1076, 80
            %v1819 = vpop.permute.xlu0 %1818
            %v1821 = vsel %vm862, %v1813, 0
            %v1824 = vsel %vm862, %v1815, 0
            %v1827 = vsel %vm862, %v1817, 0
            %v1830 = vsel %vm862, %v1819, 0
            %1832 = vmatprep.subr.bf16.mxu0 0
            %1833 = vmatpush1.bf16.msra.mxu0 %v1811
            %1834 = vmatprep.subr.bf16.mxu0 0
            %1835 = vmatpush1.bf16.msra.mxu0 0
            %1836 = vmatprep.subr.bf16.mxu0 0
            %1837 = vmatpush1.bf16.msra.mxu0 0
            %1838 = vmatprep.subr.bf16.mxu0 0
            %1839 = vmatpush1.bf16.msra.mxu0 0
            %1840 = vmatprep.subr.bf16.mxu0 0
            %1841 = vmatpush1.bf16.msra.mxu0 0
            %1842 = vmatprep.subr.bf16.mxu0 0
            %1843 = vmatpush1.bf16.msra.mxu0 0
            %1844 = vmatprep.subr.bf16.mxu0 0
            %1845 = vmatpush1.bf16.msra.mxu0 0
            %1846 = vmatprep.subr.bf16.mxu0 0
            %1847 = vmatpush1.bf16.msra.mxu0 0
            %1848 = vmatprep.subr.bf16.mxu0 0
            %1849 = vmatpush1.bf16.msra.mxu0 0
            %1850 = vmatprep.subr.bf16.mxu0 0
            %1851 = vmatpush1.bf16.msra.mxu0 0
            %1852 = vmatprep.subr.bf16.mxu0 0
            %1853 = vmatpush1.bf16.msra.mxu0 0
            %1854 = vmatprep.subr.bf16.mxu0 0
            %1855 = vmatpush1.bf16.msra.mxu0 0
            %1856 = vmatprep.subr.bf16.mxu0 0
            %1857 = vmatpush1.bf16.msra.mxu0 0
            %1858 = vmatprep.subr.bf16.mxu0 0
            %1859 = vmatpush1.bf16.msra.mxu0 0
            %1860 = vmatprep.subr.bf16.mxu0 0
            %1861 = vmatpush1.bf16.msra.mxu0 0
            %1862 = vmatprep.subr.bf16.mxu0 0
            %1863 = vmatpush1.bf16.msra.mxu0 0
            %1864 = vmatprep.mubr.bf16.mxu0 0
            %1865 = vmatmul.mubr.bf16.gmra.mrb[0].mxu0 %v1821
            %v1866 = vpop.f32.mrb[0].mxu0
            %v1867 = vadd.f32 0.0, %v1866
            %v1868 = vpop.f32.mrb[0].mxu0
            %v1869 = vpop.f32.mrb[0].mxu0
            %v1870 = vadd.f32 0.0, %v1869
            %v1871 = vpop.f32.mrb[0].mxu0
            %1872 = vmatprep.mubr.bf16.mxu0 0
            %1873 = vmatmul.mubr.bf16.gmra.mrb[0].mxu0 %v1824
            %v1874 = vpop.f32.mrb[0].mxu0
            %v1875 = vadd.f32 0.0, %v1874
            %v1876 = vpop.f32.mrb[0].mxu0
            %v1877 = vpop.f32.mrb[0].mxu0
            %v1878 = vadd.f32 0.0, %v1877
            %v1879 = vpop.f32.mrb[0].mxu0
            %1880 = vmatprep.mubr.bf16.mxu0 0
            %1881 = vmatmul.mubr.bf16.gmra.mrb[0].mxu0 %v1827
            %v1882 = vpop.f32.mrb[0].mxu0
            %v1883 = vadd.f32 0.0, %v1882
            %v1884 = vpop.f32.mrb[0].mxu0
            %v1885 = vpop.f32.mrb[0].mxu0
            %v1886 = vadd.f32 0.0, %v1885
            %v1887 = vpop.f32.mrb[0].mxu0
            %1888 = vmatprep.mubr.bf16.mxu0 0
            %1889 = vmatmul.mubr.bf16.gmra.mrb[0].mxu0 %v1830
            %v1890 = vpop.f32.mrb[0].mxu0
            %v1891 = vadd.f32 0.0, %v1890
            %v1892 = vpop.f32.mrb[0].mxu0
            %v1893 = vpop.f32.mrb[0].mxu0
            %v1894 = vadd.f32 0.0, %v1893
            %v1895 = vpop.f32.mrb[0].mxu0
            %1896 = vdwg.mxu0
            %v1897 = vpack.c.bf16 %v1870, %v1867
            %v1898 = vpack.c.bf16 %v1878, %v1875
            %v1899 = vpack.c.bf16 %v1886, %v1883
            %v1900 = vpack.c.bf16 %v1894, %v1891
            %v1901 = vld [vmem:[%s6 + $0x18] sm:$0xf]
            %v1902 = vld [vmem:[%s6 + $0x1c] sm:$0xf]
            %v1905 = vunpack.c.l.b16 %v1901
            %v1906 = vunpack.c.l.b16 %v1902
            %v1907 = vpack.c.b16 %v1906, %v1905
            %v1910 = vsel %vm862, %v1897, 0
            %v1913 = vsel %vm862, %v1898, 0
            %v1916 = vsel %vm862, %v1899, 0
            %v1919 = vsel %vm862, %v1900, 0
            %1921 = vmatprep.subr.bf16.mxu0 0
            %1922 = vmatpush1.bf16.msra.mxu0 %v1907
            %1923 = vmatprep.subr.bf16.mxu0 0
            %1924 = vmatpush1.bf16.msra.mxu0 0
            %1925 = vmatprep.subr.bf16.mxu0 0
            %1926 = vmatpush1.bf16.msra.mxu0 0
            %1927 = vmatprep.subr.bf16.mxu0 0
            %1928 = vmatpush1.bf16.msra.mxu0 0
            %1929 = vmatprep.subr.bf16.mxu0 0
            %1930 = vmatpush1.bf16.msra.mxu0 0
            %1931 = vmatprep.subr.bf16.mxu0 0
            %1932 = vmatpush1.bf16.msra.mxu0 0
            %1933 = vmatprep.subr.bf16.mxu0 0
            %1934 = vmatpush1.bf16.msra.mxu0 0
            %1935 = vmatprep.subr.bf16.mxu0 0
            %1936 = vmatpush1.bf16.msra.mxu0 0
            %1937 = vmatprep.subr.bf16.mxu0 0
            %1938 = vmatpush1.bf16.msra.mxu0 0
            %1939 = vmatprep.subr.bf16.mxu0 0
            %1940 = vmatpush1.bf16.msra.mxu0 0
            %1941 = vmatprep.subr.bf16.mxu0 0
            %1942 = vmatpush1.bf16.msra.mxu0 0
            %1943 = vmatprep.subr.bf16.mxu0 0
            %1944 = vmatpush1.bf16.msra.mxu0 0
            %1945 = vmatprep.subr.bf16.mxu0 0
            %1946 = vmatpush1.bf16.msra.mxu0 0
            %1947 = vmatprep.subr.bf16.mxu0 0
            %1948 = vmatpush1.bf16.msra.mxu0 0
            %1949 = vmatprep.subr.bf16.mxu0 0
            %1950 = vmatpush1.bf16.msra.mxu0 0
            %1951 = vmatprep.subr.bf16.mxu0 0
            %1952 = vmatpush1.bf16.msra.mxu0 0
            %1953 = vmatprep.mubr.bf16.mxu0 0
            %1954 = vmatmul.mubr.bf16.gmra.mrb[0].mxu0 %v1910
            %v1955 = vpop.f32.mrb[0].mxu0
            %v1956 = vadd.f32 0.0, %v1955
            %v1957 = vpop.f32.mrb[0].mxu0
            %v1958 = vpop.f32.mrb[0].mxu0
            %v1959 = vadd.f32 0.0, %v1958
            %v1960 = vpop.f32.mrb[0].mxu0
            %1961 = vmatprep.mubr.bf16.mxu0 0
            %1962 = vmatmul.mubr.bf16.gmra.mrb[0].mxu0 %v1913
            %v1963 = vpop.f32.mrb[0].mxu0
            %v1964 = vadd.f32 0.0, %v1963
            %v1965 = vpop.f32.mrb[0].mxu0
            %v1966 = vpop.f32.mrb[0].mxu0
            %v1967 = vadd.f32 0.0, %v1966
            %v1968 = vpop.f32.mrb[0].mxu0
            %1969 = vmatprep.mubr.bf16.mxu0 0
            %1970 = vmatmul.mubr.bf16.gmra.mrb[0].mxu0 %v1916
            %v1971 = vpop.f32.mrb[0].mxu0
            %v1972 = vadd.f32 0.0, %v1971
            %v1973 = vpop.f32.mrb[0].mxu0
            %v1974 = vpop.f32.mrb[0].mxu0
            %v1975 = vadd.f32 0.0, %v1974
            %v1976 = vpop.f32.mrb[0].mxu0
            %1977 = vmatprep.mubr.bf16.mxu0 0
            %1978 = vmatmul.mubr.bf16.gmra.mrb[0].mxu0 %v1919
            %v1979 = vpop.f32.mrb[0].mxu0
            %v1980 = vadd.f32 0.0, %v1979
            %v1981 = vpop.f32.mrb[0].mxu0
            %v1982 = vpop.f32.mrb[0].mxu0
            %v1983 = vadd.f32 0.0, %v1982
            %v1984 = vpop.f32.mrb[0].mxu0
            %1985 = vdwg.mxu0
            %v1986 = vadd.f32 %v1734, %v1956
            %v1987 = vadd.f32 %v1735, %v1959
            %v1988 = vadd.f32 %v1736, %v1964
            %v1989 = vadd.f32 %v1737, %v1967
            %v1990 = vadd.f32 %v1738, %v1972
            %v1991 = vadd.f32 %v1739, %v1975
            %v1992 = vadd.f32 %v1740, %v1980
            %v1993 = vadd.f32 %v1741, %v1983
            %1994 = vrot.lane.b32.xlu0 %v1164, 80
            %v1995 = vpop.permute.xlu0 %1994
            %v1997 = vmul.f32 %v1867, %v1995
            %v1998 = vmul.f32 %v1870, %v1995
            %v1999 = vmul.f32 %v1875, %v1995
            %v2000 = vmul.f32 %v1878, %v1995
            %v2001 = vmul.f32 %v1883, %v1995
            %v2002 = vmul.f32 %v1886, %v1995
            %v2003 = vmul.f32 %v1891, %v1995
            %v2004 = vmul.f32 %v1894, %v1995
            %v2005 = vsel %vm862, %v1997, 0.0
            %2006 = vadd.xlane.f32.xlu0 %v2005
            %v2007 = vpop.xlane.xlu0 %2006
            %v2008 = vsel %vm862, %v1998, 0.0
            %2009 = vadd.xlane.f32.xlu0 %v2008
            %v2010 = vpop.xlane.xlu0 %2009
            %v2011 = vsel %vm862, %v1999, 0.0
            %2012 = vadd.xlane.f32.xlu0 %v2011
            %v2013 = vpop.xlane.xlu0 %2012
            %v2014 = vsel %vm862, %v2000, 0.0
            %2015 = vadd.xlane.f32.xlu0 %v2014
            %v2016 = vpop.xlane.xlu0 %2015
            %v2017 = vsel %vm862, %v2001, 0.0
            %2018 = vadd.xlane.f32.xlu0 %v2017
            %v2019 = vpop.xlane.xlu0 %2018
            %v2020 = vsel %vm862, %v2002, 0.0
            %2021 = vadd.xlane.f32.xlu0 %v2020
            %v2022 = vpop.xlane.xlu0 %2021
            %v2023 = vsel %vm862, %v2003, 0.0
            %2024 = vadd.xlane.f32.xlu0 %v2023
            %v2025 = vpop.xlane.xlu0 %2024
            %v2026 = vsel %vm862, %v2004, 0.0
            %2027 = vadd.xlane.f32.xlu0 %v2026
            %v2028 = vpop.xlane.xlu0 %2027
            %v2029 = vadd.f32 %v1777, %v2007
            %v2030 = vadd.f32 %v1778, %v2010
            %v2031 = vadd.f32 %v1779, %v2013
            %v2032 = vadd.f32 %v1780, %v2016
            %v2033 = vadd.f32 %v1781, %v2019
            %v2034 = vadd.f32 %v1782, %v2022
            %v2035 = vadd.f32 %v1783, %v2025
            %v2036 = vadd.f32 %v1784, %v2028
            %v2037 = vpack.c.bf16 %v1987, %v1986
            %v2038 = vpack.c.bf16 %v1989, %v1988
            %v2039 = vpack.c.bf16 %v1991, %v1990
            %v2040 = vpack.c.bf16 %v1993, %v1992
            %2041 = vst.msk [vmem:[#allocation3] sm:$0xff] %vm578, %v2037
            %2042 = vst.msk [vmem:[#allocation3 + $0x8] sm:$0xff] %vm578, %v2038
            %2043 = vst.msk [vmem:[#allocation3 + $0x10] sm:$0xff] %vm578, %v2039
            %2044 = vst.msk [vmem:[#allocation3 + $0x18] sm:$0xff] %vm578, %v2040
            %vm2045 = vcmask 7168
            %2046 = vst.msk [vmem:[#allocation4] sm:$0xff] %vm2045, %v2029
            %2047 = vst.msk [vmem:[#allocation4 + $0x8] sm:$0xff] %vm2045, %v2030
            %2048 = vst.msk [vmem:[#allocation4 + $0x10] sm:$0xff] %vm2045, %v2031
            %2049 = vst.msk [vmem:[#allocation4 + $0x18] sm:$0xff] %vm2045, %v2032
            %2050 = vst.msk [vmem:[#allocation4 + $0x20] sm:$0xff] %vm2045, %v2033
            %2051 = vst.msk [vmem:[#allocation4 + $0x28] sm:$0xff] %vm2045, %v2034
            %2052 = vst.msk [vmem:[#allocation4 + $0x30] sm:$0xff] %vm2045, %v2035
            %2053 = vst.msk [vmem:[#allocation4 + $0x38] sm:$0xff] %vm2045, %v2036
          $region80: #{tpu_custom_call.1} parent=71 // pred_fallthru
            _
        $region72: #{tpu_custom_call.1} parent=59 // pred_fallthru
          _
        %p2054 = scmp.eq.s32.totalorder %s36, 1
        // Predicated region
        $region81: #{tpu_custom_call.1} parent=59 // pred_check
          %p2055 = pneg %p2054
        $region82: #{tpu_custom_call.1} parent=59 // pred_check_branch
          %2057 = sbr.rel (%p2055) target = $region84
        $region83: #{tpu_custom_call.1} parent=59 // pred_region
          %v2058 = vld [vmem:[%s414] sm:$0xff]
          %v2059 = vld [vmem:[%s414 + $0x8] sm:$0xff]
          %v2060 = vld [vmem:[%s414 + $0x10] sm:$0xff]
          %v2061 = vld [vmem:[%s414 + $0x18] sm:$0xff]
          %v2062 = vld [vmem:[%s414 + $0x20] sm:$0xff]
          %v2063 = vld [vmem:[%s414 + $0x28] sm:$0xff]
          %v2064 = vld [vmem:[%s414 + $0x30] sm:$0xff]
          %v2065 = vld [vmem:[%s414 + $0x38] sm:$0xff]
          %v2066 = vpack.c.bf16 %v2059, %v2058
          %v2067 = vpack.c.bf16 %v2061, %v2060
          %v2068 = vpack.c.bf16 %v2063, %v2062
          %v2069 = vpack.c.bf16 %v2065, %v2064
          %v2070 = vld [vmem:[#allocation3] sm:$0xff]
          %v2071 = vld [vmem:[#allocation3 + $0x8] sm:$0xff]
          %v2072 = vld [vmem:[#allocation3 + $0x10] sm:$0xff]
          %v2073 = vld [vmem:[#allocation3 + $0x18] sm:$0xff]
          %v2074 = vld [vmem:[#allocation4] sm:$0xff]
          %v2075 = vld [vmem:[#allocation4 + $0x8] sm:$0xff]
          %v2076 = vld [vmem:[#allocation4 + $0x10] sm:$0xff]
          %v2077 = vld [vmem:[#allocation4 + $0x18] sm:$0xff]
          %v2078 = vld [vmem:[#allocation4 + $0x20] sm:$0xff]
          %v2079 = vld [vmem:[#allocation4 + $0x28] sm:$0xff]
          %v2080 = vld [vmem:[#allocation4 + $0x30] sm:$0xff]
          %v2081 = vld [vmem:[#allocation4 + $0x38] sm:$0xff]
          %2083 = vset.pattern.permute.xlu0 0
          %2084 = vperm.xlu0 %2083, %v2074
          %v2085 = vpop.permute.xlu0 %2084
          %2088 = vset.pattern.permute.xlu0 0
          %2089 = vperm.xlu0 %2088, %v2075
          %v2090 = vpop.permute.xlu0 %2089
          %2093 = vset.pattern.permute.xlu0 0
          %2094 = vperm.xlu0 %2093, %v2076
          %v2095 = vpop.permute.xlu0 %2094
          %2098 = vset.pattern.permute.xlu0 0
          %2099 = vperm.xlu0 %2098, %v2077
          %v2100 = vpop.permute.xlu0 %2099
          %2103 = vset.pattern.permute.xlu0 0
          %2104 = vperm.xlu0 %2103, %v2078
          %v2105 = vpop.permute.xlu0 %2104
          %2108 = vset.pattern.permute.xlu0 0
          %2109 = vperm.xlu0 %2108, %v2079
          %v2110 = vpop.permute.xlu0 %2109
          %2113 = vset.pattern.permute.xlu0 0
          %2114 = vperm.xlu0 %2113, %v2080
          %v2115 = vpop.permute.xlu0 %2114
          %2118 = vset.pattern.permute.xlu0 0
          %2119 = vperm.xlu0 %2118, %v2081
          %v2120 = vpop.permute.xlu0 %2119
          %vm2122 = vcmask 523264
          %v2124 = vsel %vm2122, %v2070, 0
          %v2127 = vsel %vm2122, %v2071, 0
          %v2130 = vsel %vm2122, %v2072, 0
          %v2133 = vsel %vm2122, %v2073, 0
          %2135 = vmatprep.subr.bf16.mxu0 0
          %2136 = vmatpush1.bf16.msra.mxu0 %v2066
          %2137 = vmatprep.subr.bf16.mxu0 0
          %2138 = vmatpush1.bf16.msra.mxu0 %v2067
          %2139 = vmatprep.subr.bf16.mxu0 0
          %2140 = vmatpush1.bf16.msra.mxu0 %v2068
          %2141 = vmatprep.subr.bf16.mxu0 0
          %2142 = vmatpush1.bf16.msra.mxu0 %v2069
          %2143 = vmatprep.subr.bf16.mxu0 0
          %2144 = vmatpush1.bf16.msra.mxu0 0
          %2145 = vmatprep.subr.bf16.mxu0 0
          %2146 = vmatpush1.bf16.msra.mxu0 0
          %2147 = vmatprep.subr.bf16.mxu0 0
          %2148 = vmatpush1.bf16.msra.mxu0 0
          %2149 = vmatprep.subr.bf16.mxu0 0
          %2150 = vmatpush1.bf16.msra.mxu0 0
          %2151 = vmatprep.subr.bf16.mxu0 0
          %2152 = vmatpush1.bf16.msra.mxu0 0
          %2153 = vmatprep.subr.bf16.mxu0 0
          %2154 = vmatpush1.bf16.msra.mxu0 0
          %2155 = vmatprep.subr.bf16.mxu0 0
          %2156 = vmatpush1.bf16.msra.mxu0 0
          %2157 = vmatprep.subr.bf16.mxu0 0
          %2158 = vmatpush1.bf16.msra.mxu0 0
          %2159 = vmatprep.subr.bf16.mxu0 0
          %2160 = vmatpush1.bf16.msra.mxu0 0
          %2161 = vmatprep.subr.bf16.mxu0 0
          %2162 = vmatpush1.bf16.msra.mxu0 0
          %2163 = vmatprep.subr.bf16.mxu0 0
          %2164 = vmatpush1.bf16.msra.mxu0 0
          %2165 = vmatprep.subr.bf16.mxu0 0
          %2166 = vmatpush1.bf16.msra.mxu0 0
          %2167 = vmatprep.mubr.bf16.mxu0 0
          %2168 = vmatmul.mubr.bf16.gmra.mrb[0].mxu0 %v2124
          %v2169 = vpop.f32.mrb[0].mxu0
          %v2170 = vadd.f32 %v2085, %v2169
          %v2171 = vpop.f32.mrb[0].mxu0
          %v2172 = vpop.f32.mrb[0].mxu0
          %v2173 = vadd.f32 %v2090, %v2172
          %v2174 = vpop.f32.mrb[0].mxu0
          %2175 = vmatprep.mubr.bf16.mxu0 0
          %2176 = vmatmul.mubr.bf16.gmra.mrb[0].mxu0 %v2127
          %v2177 = vpop.f32.mrb[0].mxu0
          %v2178 = vadd.f32 %v2095, %v2177
          %v2179 = vpop.f32.mrb[0].mxu0
          %v2180 = vpop.f32.mrb[0].mxu0
          %v2181 = vadd.f32 %v2100, %v2180
          %v2182 = vpop.f32.mrb[0].mxu0
          %2183 = vmatprep.mubr.bf16.mxu0 0
          %2184 = vmatmul.mubr.bf16.gmra.mrb[0].mxu0 %v2130
          %v2185 = vpop.f32.mrb[0].mxu0
          %v2186 = vadd.f32 %v2105, %v2185
          %v2187 = vpop.f32.mrb[0].mxu0
          %v2188 = vpop.f32.mrb[0].mxu0
          %v2189 = vadd.f32 %v2110, %v2188
          %v2190 = vpop.f32.mrb[0].mxu0
          %2191 = vmatprep.mubr.bf16.mxu0 0
          %2192 = vmatmul.mubr.bf16.gmra.mrb[0].mxu0 %v2133
          %v2193 = vpop.f32.mrb[0].mxu0
          %v2194 = vadd.f32 %v2115, %v2193
          %v2195 = vpop.f32.mrb[0].mxu0
          %v2196 = vpop.f32.mrb[0].mxu0
          %v2197 = vadd.f32 %v2120, %v2196
          %v2198 = vpop.f32.mrb[0].mxu0
          %2199 = vdwg.mxu0
          %v2200 = vpack.c.bf16 %v2173, %v2170
          %v2201 = vpack.c.bf16 %v2181, %v2178
          %v2202 = vpack.c.bf16 %v2189, %v2186
          %v2203 = vpack.c.bf16 %v2197, %v2194
          %v2208 = vunpack.c.l.b16 %v2200
          %v2209 = vunpack.c.h.b16 %v2200
          %v2210 = vunpack.c.l.b16 %v2201
          %v2211 = vunpack.c.h.b16 %v2201
          %v2212 = vunpack.c.l.b16 %v2202
          %v2213 = vunpack.c.h.b16 %v2202
          %v2214 = vunpack.c.l.b16 %v2203
          %v2215 = vunpack.c.h.b16 %v2203
          %v2216 = vpack.c.b16 %v2208, %v2208
          %v2217 = vpack.c.b16 %v2209, %v2209
          %v2218 = vpack.c.b16 %v2210, %v2210
          %v2219 = vpack.c.b16 %v2211, %v2211
          %v2220 = vpack.c.b16 %v2212, %v2212
          %v2221 = vpack.c.b16 %v2213, %v2213
          %v2222 = vpack.c.b16 %v2214, %v2214
          %v2223 = vpack.c.b16 %v2215, %v2215
          %2232 = vst [vmem:[%s455] sm:$0xf] %v2216
          %2233 = vst [vmem:[%s455 + $0x4] sm:$0xf] %v2217
          %2234 = vst [vmem:[%s455 + $0x8] sm:$0xf] %v2218
          %2235 = vst [vmem:[%s455 + $0xc] sm:$0xf] %v2219
          %2236 = vst [vmem:[%s455 + $0x10] sm:$0xf] %v2220
          %2237 = vst [vmem:[%s455 + $0x14] sm:$0xf] %v2221
          %2238 = vst [vmem:[%s455 + $0x18] sm:$0xf] %v2222
          %2239 = vst [vmem:[%s455 + $0x1c] sm:$0xf] %v2223
        $region84: #{tpu_custom_call.1} parent=59 // pred_fallthru
          _
        %s2240 = sand.u32 %s291, 1
        %s2241 = scalar_lea.sflag [#allocation7], %s2240
        %s2242 = sand.u32 %s291, 1
        %s2243 = smul.addr %s2242, 32
        %s2244 = scalar_lea.vmem [#allocation10], %s2243
        // Predicated region
        $region85: #{tpu_custom_call.1} parent=59 // pred_check
          %p2245 = pneg %p301
        $region86: #{tpu_custom_call.1} parent=59 // pred_check_branch
          %2247 = sbr.rel (%p2245) target = $region88
        $region87: #{tpu_custom_call.1} parent=59 // pred_region
          %s2248 = smul.u32 %s37, %s36
          %s2250 = ssub.s32 512, 512
          %2251 = vsyncadd %s2241, %s2250
          %s2252 = smul.addr %s35, 16
          %s2253 = sadd.s32 %s2248, %s2252
          %s2254 = smul.addr %s2253, 64
          %s2255 = scalar_lea.hbm %s10, %s2254
          %s2256 = sshll.u32 %s2244, 4
          %s2257 = int_to_ptr.vmem [resolvable:$true] %s2256
          %2262 = dma.vmem_to_hbm [thread:$0]  %s2257, 512, %s2255, %s2241, 64, 128, 4
        $region88: #{tpu_custom_call.1} parent=59 // pred_fallthru
          _
      $region60: #{tpu_custom_call.1} parent=5 // pred_fallthru
        _
      %p2263 = scmp.le.s32.totalorder 2, %s25
      // Predicated region
      $region89: #{tpu_custom_call.1} parent=5 // pred_check
        %p2264 = pneg %p2263
      $region90: #{tpu_custom_call.1} parent=5 // pred_check_branch
        %2266 = sbr.rel (%p2264) target = $region92
      $region91: #{tpu_custom_call.1} parent=5 // pred_region
        %s2267 = ssub.s32 %s25, 2
        // Predicated region
        $region93: #{tpu_custom_call.1} parent=91 // pred_check
          %p2268 = pneg %p307
        $region94: #{tpu_custom_call.1} parent=91 // pred_check_branch
          %2270 = sbr.rel (%p2268) target = $region96
        $region95: #{tpu_custom_call.1} parent=91 // pred_region
          %s2271 = sand.u32 %s292, 1
          %s2272 = scalar_lea.sflag [#allocation7], %s2271
          %s2273 = sand.u32 %s292, 1
          %s2274 = smul.addr %s2273, 32
          %s2275 = scalar_lea.vmem [#allocation10], %s2274
          %2276 = dma.done %s2272, 512
        $region96: #{tpu_custom_call.1} parent=91 // pred_fallthru
          _
      $region92: #{tpu_custom_call.1} parent=5 // pred_fallthru
        _
    $region6: #{tpu_custom_call.1} parent=1 // loop_footer
      %s29 = sadd.s32 1, %s25
    $region7: #{tpu_custom_call.1} parent=1 // loop_footer_branch
      %24 = sbr.rel target = $region3
    $region8: #{tpu_custom_call.1} parent=1 // loop_exit
      _
    %2277 = vsyncpa [#allocation6], 1
    %s2278 = scalar_lea.sflag [#allocation6], 1
    %2279 = vsyncpa %s2278, 1
    %2280 = vsyncpa [#allocation9], 1
    %s2281 = scalar_lea.sflag [#allocation9], 1
    %2282 = vsyncpa %s2281, 1
    %2283 = vsyncpa [#allocation7], 1
    %s2284 = scalar_lea.sflag [#allocation7], 1
    %2285 = vsyncpa %s2284, 1

</llo_original>
